<compile_context>
chip_gen: v5e
topology: v5e:2x2
jax: 0.10.0
libtpu: 0.0.40
codegen_flags: <defaults>
</compile_context>

<pallas_src>
import jax
import jax.numpy as jnp
from jax import lax
from jax.experimental import pallas as pl
from jax.experimental.pallas import tpu as pltpu

HIDDEN = 768
OUT = 2
OUT_PAD = 128          # MXU-friendly 128-lane width for the folded weight
EPS = 1e-12
_MAX_TILE_ROWS = 512   # caps double-buffered activation VMEM even at B*S >= 8K


def _fused_kernel(x529_ref, x526_ref, w_ref, b_ref, o_ref):
    # Dropout in eval mode is identity.  Upcast to f32 right after load so all
    # VPU math / LN statistics / MXU accumulation are f32 even for bf16 inputs.
    x = x529_ref[...].astype(jnp.float32) + x526_ref[...].astype(jnp.float32)

    # LayerNorm statistics in a single pass over the hidden axis.
    mean = jnp.mean(x, axis=-1, keepdims=True)                 # (TS, 1)
    mean_sq = jnp.mean(x * x, axis=-1, keepdims=True)          # (TS, 1)
    var = mean_sq - mean * mean
    inv = lax.rsqrt(var + EPS)
    y = (x - mean) * inv                                       # (TS, H), f32

    # Linear with the LN affine folded in: (TS, H) @ (H, OUT_PAD) on the MXU,
    # then store only the OUT useful columns (output array is unpadded).
    acc = jnp.dot(y, w_ref[...], preferred_element_type=jnp.float32) + b_ref[...]
    o_ref[...] = acc[:, :OUT]


def prepare_params(gamma, beta, weight, bias):
    """Fold LayerNorm affine into the Linear and pad to 128 lanes.

    Call ONCE at init (hoisted out of the per-call path).
      W' = gamma[:, None] * W          (H, OUT)
      b' = beta @ W + bias             (OUT,)
    """
    gamma_f = gamma.astype(jnp.float32)
    beta_f = beta.astype(jnp.float32)
    weight_f = weight.astype(jnp.float32)
    bias_f = bias.astype(jnp.float32)
    w_folded = gamma_f[:, None] * weight_f
    b_folded = beta_f @ weight_f + bias_f
    w_pad = jnp.zeros((HIDDEN, OUT_PAD), jnp.float32).at[:, :OUT].set(w_folded)
    b_pad = jnp.zeros((1, OUT_PAD), jnp.float32).at[:, :OUT].set(b_folded)
    return w_pad, b_pad


def _pick_tile_rows(rows):
    """Row-tile size: multiple of 8, <= _MAX_TILE_ROWS, >= 4 grid steps when
    rows allow (>= 2 steps per TensorCore under v7x megacore)."""
    if rows <= 32:
        return rows                      # single block (equals full array dim)
    tile = min(_MAX_TILE_ROWS, pl.cdiv(rows, 4))
    tile = max(8, ((tile + 7) // 8) * 8)
    return tile


@jax.jit
def fused_forward(x529, x526, w_pad, b_pad):
    """x529, x526: (B, S, H) in f32 or bf16.  Returns (B, S, OUT) in f32."""
    B, S, H = x529.shape
    assert H == HIDDEN
    assert x526.shape == x529.shape
    rows = B * S

    x529_2d = x529.reshape(rows, H)
    x526_2d = x526.reshape(rows, H)

    tile_s = _pick_tile_rows(rows)
    grid = (pl.cdiv(rows, tile_s),)      # ragged last block handled by Pallas

    cost = pl.CostEstimate(
        flops=2 * rows * H * OUT_PAD + 8 * rows * H,
        transcendentals=rows,
        bytes_accessed=(rows * H * (x529_2d.dtype.itemsize
                                    + x526_2d.dtype.itemsize)
                        + (H * OUT_PAD + OUT_PAD + rows * OUT) * 4),
    )

    out = pl.pallas_call(
        _fused_kernel,
        out_shape=jax.ShapeDtypeStruct((rows, OUT), jnp.float32),
        grid_spec=pltpu.PrefetchScalarGridSpec(
            num_scalar_prefetch=0,
            grid=grid,
            in_specs=[
                pl.BlockSpec((tile_s, H), lambda i: (i, 0)),       # x529 tile
                pl.BlockSpec((tile_s, H), lambda i: (i, 0)),       # x526 tile
                pl.BlockSpec((H, OUT_PAD), lambda i: (0, 0)),      # folded W
                pl.BlockSpec((1, OUT_PAD), lambda i: (0, 0)),      # folded b
            ],
            out_specs=pl.BlockSpec((tile_s, OUT), lambda i: (i, 0)),
        ),
        compiler_params=pltpu.CompilerParams(
            dimension_semantics=("parallel",),
        ),
        cost_estimate=cost,
    )(x529_2d, x526_2d, w_pad, b_pad)

    return out.reshape(B, S, OUT)


def reference_forward(x529, x526, gamma, beta, weight, bias):
    x = x529.astype(jnp.float32) + x526.astype(jnp.float32)
    mean = jnp.mean(x, axis=-1, keepdims=True)
    var = jnp.mean((x - mean) ** 2, axis=-1, keepdims=True)
    y = (x - mean) / jnp.sqrt(var + EPS) * gamma + beta
    return jnp.einsum("bsh,ho->bso", y, weight,
                      precision=lax.Precision.HIGHEST) + bias


if __name__ == "__main__":
    key = jax.random.PRNGKey(0)
    k1, k2, k3, k4, k5, k6 = jax.random.split(key, 6)

    B, S, H = 1, 384, HIDDEN

    # Inputs (deterministic), matching the module's (1, 384, 768) shapes.
    x529 = jax.random.normal(k1, (B, S, H), dtype=jnp.float32)
    x526 = jax.random.normal(k2, (B, S, H), dtype=jnp.float32)

    # Parameters (deterministic, synthetic -- matches module shapes).
    gamma = 1.0 + 0.01 * jax.random.normal(k3, (H,), dtype=jnp.float32)
    beta = 0.01 * jax.random.normal(k4, (H,), dtype=jnp.float32)
    # Linear(768 -> 2): PyTorch stores weight as (out, in); we pass (in, out).
    weight = 0.02 * jax.random.normal(k5, (H, OUT), dtype=jnp.float32)
    bias = 0.02 * jax.random.normal(k6, (OUT,), dtype=jnp.float32)

    # Hoisted out of the per-call path: fold + pad once at init.
    w_pad, b_pad = prepare_params(gamma, beta, weight, bias)

    # --- f32 activation path ------------------------------------------------
    out_f32 = jax.block_until_ready(fused_forward(x529, x526, w_pad, b_pad))
    ref_f32 = reference_forward(x529, x526, gamma, beta, weight, bias)
    assert out_f32.shape == (B, S, OUT), out_f32.shape
    assert jnp.allclose(out_f32, ref_f32, atol=1e-3, rtol=1e-3), \
        "f32 path mismatch vs reference"

    # --- bf16 activation path (halves the dominant HBM read) ----------------
    x529_bf = x529.astype(jnp.bfloat16)
    x526_bf = x526.astype(jnp.bfloat16)
    out_bf = jax.block_until_ready(fused_forward(x529_bf, x526_bf, w_pad, b_pad))
    ref_bf = reference_forward(x529_bf, x526_bf, gamma, beta, weight, bias)
    assert out_bf.shape == (B, S, OUT), out_bf.shape
    assert jnp.allclose(out_bf, ref_bf, atol=1e-3, rtol=1e-3), \
        "bf16 path mismatch vs reference"

    print("KERNEL_OK")
</pallas_src>

<mosaic_0001>
module attributes {stable_mosaic.version = 11 : i64} {
  func.func @_fused_kernel(%arg0: i32, %arg1: memref<96x768xf32, #tpu.memory_space<vmem>>, %arg2: memref<96x768xf32, #tpu.memory_space<vmem>>, %arg3: memref<768x128xf32, #tpu.memory_space<vmem>>, %arg4: memref<1x128xf32, #tpu.memory_space<vmem>>, %arg5: memref<96x2xf32, #tpu.memory_space<vmem>>) attributes {dimension_semantics = [#tpu.dimension_semantics<parallel>], iteration_bounds = array<i64: 4>, scalar_prefetch = 0 : i64, scratch_operands = 0 : i64, tpu.core_type = #tpu.core_type<tc>, window_params = [{transform_indices = @transform_0, window_bounds = array<i64: 96, 768>}, {transform_indices = @transform_1, window_bounds = array<i64: 96, 768>}, {pipeline_mode = #tpu.pipeline_mode<synchronous>, transform_indices = @transform_2, window_bounds = array<i64: 768, 128>}, {pipeline_mode = #tpu.pipeline_mode<synchronous>, transform_indices = @transform_3, window_bounds = array<i64: 1, 128>}, {transform_indices = @transform_4, window_bounds = array<i64: 96, 2>}]} {
    %c0 = arith.constant 0 : index
    %c0_0 = arith.constant 0 : index
    %0 = vector.load %arg1[%c0, %c0_0] : memref<96x768xf32, #tpu.memory_space<vmem>>, vector<96x768xf32>
    %c0_1 = arith.constant 0 : index
    %c0_2 = arith.constant 0 : index
    %1 = vector.load %arg2[%c0_1, %c0_2] : memref<96x768xf32, #tpu.memory_space<vmem>>, vector<96x768xf32>
    %2 = arith.addf %0, %1 : vector<96x768xf32>
    %cst = arith.constant dense<0.000000e+00> : vector<96xf32>
    %3 = vector.multi_reduction <add>, %2, %cst [1] : vector<96x768xf32> to vector<96xf32>
    %4 = vector.shape_cast %3 : vector<96xf32> to vector<96x1xf32>
    %cst_3 = arith.constant 7.680000e+02 : f32
    %5 = vector.broadcast %cst_3 : f32 to vector<96x1xf32>
    %6 = arith.divf %4, %5 : vector<96x1xf32>
    %7 = arith.mulf %2, %2 : vector<96x768xf32>
    %cst_4 = arith.constant dense<0.000000e+00> : vector<96xf32>
    %8 = vector.multi_reduction <add>, %7, %cst_4 [1] : vector<96x768xf32> to vector<96xf32>
    %9 = vector.shape_cast %8 : vector<96xf32> to vector<96x1xf32>
    %cst_5 = arith.constant 7.680000e+02 : f32
    %10 = vector.broadcast %cst_5 : f32 to vector<96x1xf32>
    %11 = arith.divf %9, %10 : vector<96x1xf32>
    %12 = arith.mulf %6, %6 : vector<96x1xf32>
    %13 = arith.subf %11, %12 : vector<96x1xf32>
    %cst_6 = arith.constant 9.99999996E-13 : f32
    %14 = vector.broadcast %cst_6 : f32 to vector<96x1xf32>
    %15 = arith.addf %13, %14 : vector<96x1xf32>
    %16 = math.rsqrt %15 : vector<96x1xf32>
    %17 = vector.broadcast %6 : vector<96x1xf32> to vector<96x768xf32>
    %18 = arith.subf %2, %17 : vector<96x768xf32>
    %19 = vector.broadcast %16 : vector<96x1xf32> to vector<96x768xf32>
    %20 = arith.mulf %18, %19 : vector<96x768xf32>
    %c0_7 = arith.constant 0 : index
    %c0_8 = arith.constant 0 : index
    %21 = vector.load %arg3[%c0_7, %c0_8] : memref<768x128xf32, #tpu.memory_space<vmem>>, vector<768x128xf32>
    %cst_9 = arith.constant dense<0.000000e+00> : vector<96x128xf32>
    %22 = tpu.matmul %20, %21, %cst_9 {dimension_numbers = #tpu.dot_dimension_numbers<[1], [0], [0], [1], [0, 0, 1, 1], [], []>} : vector<96x768xf32>, vector<768x128xf32>, vector<96x128xf32> -> vector<96x128xf32>
    %c0_10 = arith.constant 0 : index
    %c0_11 = arith.constant 0 : index
    %23 = vector.load %arg4[%c0_10, %c0_11] : memref<1x128xf32, #tpu.memory_space<vmem>>, vector<1x128xf32>
    %24 = vector.broadcast %23 : vector<1x128xf32> to vector<96x128xf32>
    %25 = arith.addf %22, %24 : vector<96x128xf32>
    %26 = vector.extract_strided_slice %25 {offsets = [0, 0], sizes = [96, 2], strides = [1, 1]} : vector<96x128xf32> to vector<96x2xf32>
    %c0_12 = arith.constant 0 : index
    %c0_13 = arith.constant 0 : index
    %27 = vector.load %arg5[%c0_12, %c0_13] : memref<96x2xf32, #tpu.memory_space<vmem>>, vector<96x2xf32>
    tpu.vector_store %arg5[%c0_12, %c0_13], %26 {strides = array<i32>} : memref<96x2xf32, #tpu.memory_space<vmem>>, vector<96x2xf32>,
    return
  }
  func.func @transform_0(%arg0: i32) -> (i32, i32) {
    %c0_i32 = arith.constant 0 : i32
    %c0_i32_0 = arith.constant 0 : i32
    return %arg0, %c0_i32 : i32, i32
  }
  func.func @transform_1(%arg0: i32) -> (i32, i32) {
    %c0_i32 = arith.constant 0 : i32
    %c0_i32_0 = arith.constant 0 : i32
    return %arg0, %c0_i32 : i32, i32
  }
  func.func @transform_2(%arg0: i32) -> (i32, i32) {
    %c0_i32 = arith.constant 0 : i32
    %c0_i32_0 = arith.constant 0 : i32
    %c0_i32_1 = arith.constant 0 : i32
    return %c0_i32, %c0_i32_0 : i32, i32
  }
  func.func @transform_3(%arg0: i32) -> (i32, i32) {
    %c0_i32 = arith.constant 0 : i32
    %c0_i32_0 = arith.constant 0 : i32
    %c0_i32_1 = arith.constant 0 : i32
    return %c0_i32, %c0_i32_0 : i32, i32
  }
  func.func @transform_4(%arg0: i32) -> (i32, i32) {
    %c0_i32 = arith.constant 0 : i32
    %c0_i32_0 = arith.constant 0 : i32
    return %arg0, %c0_i32 : i32, i32
  }
}

</mosaic_0001>

<llo_original>
// kernel: fused_forward.1
$region0: #{fused_forward.1}
  #allocation0 [shape = 'u32[]', space=smem, size = 0x4, offset = 0x4, fixed_abs, tag = 'smem constant byte address 0x4 - core index']
  #allocation1 [shape = 'u32[72,128]{1,0:T(1,128)}', space=vmem, size = 0x9000, scoped, tag = 'internal scratch']
  %s0 = inlined_call_operand.hbm [shape: f32[384,768], index: 0, kind: input, shape index: {}]
  %s1 = inlined_call_operand.hbm [shape: f32[384,768], index: 1, kind: input, shape index: {}]
  %s2 = inlined_call_operand.hbm [shape: f32[768,128], index: 2, kind: input, shape index: {}]
  %s3 = inlined_call_operand.hbm [shape: f32[1,128], index: 3, kind: input, shape index: {}]
  %s4 = inlined_call_operand.vmem [shape: f32[384,2], index: 4, kind: output, shape index: {}]
  %s5 = sld [smem:[#allocation0]]
  $region65: #{fused_forward.1} parent=0
    _
  %s7 = ssub.s32 1, %s5
  %s8 = scalar_select 0, %s7, %s5
  $region1: #{fused_forward.1} parent=0
    #allocation2 [shape = 'u8[589824]{0}', space=vmem, size = 0x90000, scoped, tag = 'input window, operand 0']
    #allocation3 [shape = 's32[2]{0}', space=sflag, size = 0x8, scoped, tag = 'scoped memory for fused_forward.1']
    #allocation4 [shape = 'u8[589824]{0}', space=vmem, size = 0x90000, scoped, tag = 'input window, operand 1']
    #allocation5 [shape = 's32[2]{0}', space=sflag, size = 0x8, scoped, tag = 'scoped memory for fused_forward.1']
    #allocation6 [shape = 'u8[393216]{0}', space=vmem, size = 0x60000, scoped, tag = 'input window, operand 2, single buffered']
    #allocation7 [shape = 'u8[512]{0}', space=vmem, size = 0x400, scoped, tag = 'input window, operand 3, single buffered']
    #allocation8 [shape = 's32[1]{0}', space=sflag, size = 0x4, scoped, tag = 'scoped memory for fused_forward.1']
    %9 = vsyncpa [#allocation3], 0
    %s10 = scalar_lea.sflag [#allocation3], 1
    %11 = vsyncpa %s10, 0
    %12 = vsyncpa [#allocation5], 0
    %s13 = scalar_lea.sflag [#allocation5], 1
    %14 = vsyncpa %s13, 0
    %15 = vsyncpa [#allocation8], 0
    loop: start=0, step=1, limit=6
    $region2: #{fused_forward.1} parent=1 // loop_pre_header
      _
    $region3: #{fused_forward.1} parent=1 // loop_header
      %s17 = sphi 0, %s21
      %p18 = scmp.ge.s32.totalorder %s17, 6
      %s27 = sphi 0, %s29
      %s30 = sphi 0, %s27
      %s31 = sphi 0, %s30
      %s47 = sphi 0, %s31
      %s53 = sphi 0, %s55
      %s56 = sphi 0, %s53
      %s57 = sphi 0, %s56
      %s73 = sphi 0, %s57
      %s77 = sphi 0, %s77
      %s79 = sphi 0, %s77
      %s80 = sphi 0, %s79
      %s94 = sphi 0, %s80
      %s98 = sphi 0, %s98
      %s100 = sphi 0, %s98
      %s101 = sphi 0, %s100
      %s115 = sphi 0, %s101
      %s121 = sphi 0, %s123
      %s124 = sphi 0, %s121
      %s125 = sphi 0, %s124
      %s141 = sphi 0, %s125
    $region4: #{fused_forward.1} parent=1 // loop_header_branch
      %20 = sbr.rel (%p18) target = $region8
    $region5: #{fused_forward.1} parent=1 // loop_body
      %s22 = ssub.s32 %s17, 1
      %s23 = ssub.s32 %s17, 2
      %s24 = sadd.s32 %s17, 1
      %s25 = ssub.s32 %s17, %s24
      %p26 = scmp.eq.s32.totalorder %s25, 0
      %s28 = sadd.s32 %s27, 1
      %s29 = scalar_select %p26, %s27, %s28
      %p32 = pneg %p26
      %p33 = scmp.eq.s32.totalorder %s17, 3
      %p34 = por %p32, %p33
      %p35 = scmp.ne.s32.totalorder %s27, %s30
      %p36 = scmp.eq.s32.totalorder %s17, 0
      %p37 = por %p35, %p36
      %p38 = scmp.ne.s32.totalorder %s27, %s30
      %p39 = scmp.eq.s32.totalorder %s22, 3
      %p40 = por %p38, %p39
      %p41 = scmp.ne.s32.totalorder %s30, %s31
      %p42 = scmp.eq.s32.totalorder %s22, 0
      %p43 = por %p41, %p42
      %p44 = scmp.ne.s32.totalorder %s30, %s31
      %p45 = scmp.eq.s32.totalorder %s23, 3
      %p46 = por %p44, %p45
      %p48 = scmp.ne.s32.totalorder %s31, %s47
      %p49 = scmp.eq.s32.totalorder %s23, 0
      %p50 = por %p48, %p49
      %s51 = ssub.s32 %s17, %s24
      %p52 = scmp.eq.s32.totalorder %s51, 0
      %s54 = sadd.s32 %s53, 1
      %s55 = scalar_select %p52, %s53, %s54
      %p58 = pneg %p52
      %p59 = scmp.eq.s32.totalorder %s17, 3
      %p60 = por %p58, %p59
      %p61 = scmp.ne.s32.totalorder %s53, %s56
      %p62 = scmp.eq.s32.totalorder %s17, 0
      %p63 = por %p61, %p62
      %p64 = scmp.ne.s32.totalorder %s53, %s56
      %p65 = scmp.eq.s32.totalorder %s22, 3
      %p66 = por %p64, %p65
      %p67 = scmp.ne.s32.totalorder %s56, %s57
      %p68 = scmp.eq.s32.totalorder %s22, 0
      %p69 = por %p67, %p68
      %p70 = scmp.ne.s32.totalorder %s56, %s57
      %p71 = scmp.eq.s32.totalorder %s23, 3
      %p72 = por %p70, %p71
      %p74 = scmp.ne.s32.totalorder %s57, %s73
      %p75 = scmp.eq.s32.totalorder %s23, 0
      %p76 = por %p74, %p75
      %s78 = sadd.s32 %s77, 1
      %p81 = scmp.eq.s32.totalorder %s17, 3
      %p82 = scmp.ne.s32.totalorder %s77, %s79
      %p83 = scmp.eq.s32.totalorder %s17, 0
      %p84 = por %p82, %p83
      %p85 = scmp.ne.s32.totalorder %s77, %s79
      %p86 = scmp.eq.s32.totalorder %s22, 3
      %p87 = por %p85, %p86
      %p88 = scmp.ne.s32.totalorder %s79, %s80
      %p89 = scmp.eq.s32.totalorder %s22, 0
      %p90 = por %p88, %p89
      %p91 = scmp.ne.s32.totalorder %s79, %s80
      %p92 = scmp.eq.s32.totalorder %s23, 3
      %p93 = por %p91, %p92
      %p95 = scmp.ne.s32.totalorder %s80, %s94
      %p96 = scmp.eq.s32.totalorder %s23, 0
      %p97 = por %p95, %p96
      %s99 = sadd.s32 %s98, 1
      %p102 = scmp.eq.s32.totalorder %s17, 3
      %p103 = scmp.ne.s32.totalorder %s98, %s100
      %p104 = scmp.eq.s32.totalorder %s17, 0
      %p105 = por %p103, %p104
      %p106 = scmp.ne.s32.totalorder %s98, %s100
      %p107 = scmp.eq.s32.totalorder %s22, 3
      %p108 = por %p106, %p107
      %p109 = scmp.ne.s32.totalorder %s100, %s101
      %p110 = scmp.eq.s32.totalorder %s22, 0
      %p111 = por %p109, %p110
      %p112 = scmp.ne.s32.totalorder %s100, %s101
      %p113 = scmp.eq.s32.totalorder %s23, 3
      %p114 = por %p112, %p113
      %p116 = scmp.ne.s32.totalorder %s101, %s115
      %p117 = scmp.eq.s32.totalorder %s23, 0
      %p118 = por %p116, %p117
      %s119 = ssub.s32 %s17, %s24
      %p120 = scmp.eq.s32.totalorder %s119, 0
      %s122 = sadd.s32 %s121, 1
      %s123 = scalar_select %p120, %s121, %s122
      %p126 = pneg %p120
      %p127 = scmp.eq.s32.totalorder %s17, 3
      %p128 = por %p126, %p127
      %p129 = scmp.ne.s32.totalorder %s121, %s124
      %p130 = scmp.eq.s32.totalorder %s17, 0
      %p131 = por %p129, %p130
      %p132 = scmp.ne.s32.totalorder %s121, %s124
      %p133 = scmp.eq.s32.totalorder %s22, 3
      %p134 = por %p132, %p133
      %p135 = scmp.ne.s32.totalorder %s124, %s125
      %p136 = scmp.eq.s32.totalorder %s22, 0
      %p137 = por %p135, %p136
      %p138 = scmp.ne.s32.totalorder %s124, %s125
      %p139 = scmp.eq.s32.totalorder %s23, 3
      %p140 = por %p138, %p139
      %p142 = scmp.ne.s32.totalorder %s125, %s141
      %p143 = scmp.eq.s32.totalorder %s23, 0
      %p144 = por %p142, %p143
      %p145 = scmp.le.s32.totalorder 1, %s17
      %p146 = scmp.lt.s32.totalorder %s17, 5
      %p147 = pnand %p145, %p146
      %p148 = pneg %p147
      // Predicated region
      $region9: #{fused_forward.1} parent=5 // pred_check
        _
      $region10: #{fused_forward.1} parent=5 // pred_check_branch
        %150 = sbr.rel (%p147) target = $region12
      $region11: #{fused_forward.1} parent=5 // pred_region
        %s151 = ssub.s32 %s17, 1
        // Predicated region
        $region13: #{fused_forward.1} parent=11 // pred_check
          %p152 = pneg %p90
        $region14: #{fused_forward.1} parent=11 // pred_check_branch
          %154 = sbr.rel (%p152) target = $region16
        $region15: #{fused_forward.1} parent=11 // pred_region
          %156 = vsyncadd [#allocation5], 0
          %s157 = sshll.u32 %s2, 4
          %s158 = int_to_ptr.hbm [resolvable:$true] %s157
          %s159 = sshll.u32 [#allocation6], 4
          %s160 = int_to_ptr.vmem [resolvable:$true] %s159
          %165 = dma.hbm_to_vmem [thread:$0]  %s158, 12288, %s160, [#allocation5], 128, 128, 8
        $region16: #{fused_forward.1} parent=11 // pred_fallthru
          _
        // Predicated region
        $region17: #{fused_forward.1} parent=11 // pred_check
          %p166 = pneg %p111
        $region18: #{fused_forward.1} parent=11 // pred_check_branch
          %168 = sbr.rel (%p166) target = $region20
        $region19: #{fused_forward.1} parent=11 // pred_region
          %170 = vsyncadd [#allocation8], 0
          %s172 = sshll.u32 %s3, 4
          %s173 = int_to_ptr.hbm [resolvable:$true] %s172
          %s174 = sshll.u32 [#allocation7], 4
          %s175 = int_to_ptr.vmem [resolvable:$true] %s174
          %177 = dma.hbm_to_vmem [thread:$0]  %s173, 16, %s175, [#allocation8]
        $region20: #{fused_forward.1} parent=11 // pred_fallthru
          _
      $region12: #{fused_forward.1} parent=5 // pred_fallthru
        _
      %p178 = scmp.lt.s32.totalorder %s17, 4
      // Predicated region
      $region21: #{fused_forward.1} parent=5 // pred_check
        %p179 = pneg %p178
      $region22: #{fused_forward.1} parent=5 // pred_check_branch
        %181 = sbr.rel (%p179) target = $region24
      $region23: #{fused_forward.1} parent=5 // pred_region
        // Predicated region
        $region25: #{fused_forward.1} parent=23 // pred_check
          %p182 = pneg %p37
        $region26: #{fused_forward.1} parent=23 // pred_check_branch
          %184 = sbr.rel (%p182) target = $region28
        $region27: #{fused_forward.1} parent=23 // pred_region
          %s185 = sand.u32 %s27, 1
          %s186 = scalar_lea.sflag [#allocation3], %s185
          %s187 = sand.u32 %s27, 1
          %s188 = smul.addr %s187, 576
          %s189 = scalar_lea.vmem [#allocation2], %s188
          %s190 = smul.u32 12, %s17
          %192 = vsyncadd %s186, 0
          %s193 = smul.addr %s190, 6
          %s194 = smul.addr %s193, 8
          %s195 = scalar_lea.hbm %s0, %s194
          %s196 = sshll.u32 %s195, 4
          %s197 = int_to_ptr.hbm [resolvable:$true] %s196
          %s198 = sshll.u32 %s189, 4
          %s199 = int_to_ptr.vmem [resolvable:$true] %s198
          %204 = dma.hbm_to_vmem [thread:$0]  %s197, 9216, %s199, %s186, 768, 768, 48
        $region28: #{fused_forward.1} parent=23 // pred_fallthru
          _
        // Predicated region
        $region29: #{fused_forward.1} parent=23 // pred_check
          %p205 = pneg %p63
        $region30: #{fused_forward.1} parent=23 // pred_check_branch
          %207 = sbr.rel (%p205) target = $region32
        $region31: #{fused_forward.1} parent=23 // pred_region
          %s208 = sand.u32 %s17, 1
          %s209 = scalar_lea.sflag [#allocation5], %s208
          %s210 = sand.u32 %s53, 1
          %s211 = smul.addr %s210, 576
          %s212 = scalar_lea.vmem [#allocation4], %s211
          %s213 = smul.u32 12, %s17
          %215 = vsyncadd %s209, 0
          %s216 = smul.addr %s213, 6
          %s217 = smul.addr %s216, 8
          %s218 = scalar_lea.hbm %s1, %s217
          %s219 = sshll.u32 %s218, 4
          %s220 = int_to_ptr.hbm [resolvable:$true] %s219
          %s221 = sshll.u32 %s212, 4
          %s222 = int_to_ptr.vmem [resolvable:$true] %s221
          %227 = dma.hbm_to_vmem [thread:$0]  %s220, 9216, %s222, %s209, 768, 768, 48
        $region32: #{fused_forward.1} parent=23 // pred_fallthru
          _
      $region24: #{fused_forward.1} parent=5 // pred_fallthru
        _
      %p228 = scmp.le.s32.totalorder 1, %s17
      %p229 = scmp.lt.s32.totalorder %s17, 5
      %p230 = pnand %p228, %p229
      %p231 = pneg %p230
      // Predicated region
      $region33: #{fused_forward.1} parent=5 // pred_check
        _
      $region34: #{fused_forward.1} parent=5 // pred_check_branch
        %233 = sbr.rel (%p230) target = $region36
      $region35: #{fused_forward.1} parent=5 // pred_region
        %s234 = ssub.s32 %s17, 1
        %s235 = sand.u32 %s30, 1
        %s236 = scalar_lea.sflag [#allocation3], %s235
        %s237 = sand.u32 %s30, 1
        %s238 = smul.addr %s237, 576
        %s239 = scalar_lea.vmem [#allocation2], %s238
        // Predicated region
        $region37: #{fused_forward.1} parent=35 // pred_check
          %p240 = pneg %p43
        $region38: #{fused_forward.1} parent=35 // pred_check_branch
          %242 = sbr.rel (%p240) target = $region40
        $region39: #{fused_forward.1} parent=35 // pred_region
          %244 = dma.done %s236, 9216
        $region40: #{fused_forward.1} parent=35 // pred_fallthru
          _
        %s245 = sand.u32 %s22, 1
        %s246 = scalar_lea.sflag [#allocation5], %s245
        %s247 = sand.u32 %s56, 1
        %s248 = smul.addr %s247, 576
        %s249 = scalar_lea.vmem [#allocation4], %s248
        // Predicated region
        $region41: #{fused_forward.1} parent=35 // pred_check
          %p250 = pneg %p69
        $region42: #{fused_forward.1} parent=35 // pred_check_branch
          %252 = sbr.rel (%p250) target = $region44
        $region43: #{fused_forward.1} parent=35 // pred_region
          %254 = dma.done %s246, 9216
        $region44: #{fused_forward.1} parent=35 // pred_fallthru
          _
        // Predicated region
        $region45: #{fused_forward.1} parent=35 // pred_check
          %p255 = pneg %p90
        $region46: #{fused_forward.1} parent=35 // pred_check_branch
          %257 = sbr.rel (%p255) target = $region48
        $region47: #{fused_forward.1} parent=35 // pred_region
          %259 = dma.done [#allocation5], 12288
        $region48: #{fused_forward.1} parent=35 // pred_fallthru
          _
        // Predicated region
        $region49: #{fused_forward.1} parent=35 // pred_check
          %p260 = pneg %p111
        $region50: #{fused_forward.1} parent=35 // pred_check_branch
          %262 = sbr.rel (%p260) target = $region52
        $region51: #{fused_forward.1} parent=35 // pred_region
          %264 = dma.done [#allocation8], 16
        $region52: #{fused_forward.1} parent=35 // pred_fallthru
          _
        %s265 = sand.u32 %s30, 1
        %s266 = scalar_lea.sflag [#allocation3], %s265
        %s267 = sand.u32 %s30, 1
        %s268 = smul.addr %s267, 576
        %s269 = scalar_lea.vmem [#allocation2], %s268
        %p270 = pneg %p43
        %p271 = pneg %p40
        %s272 = sand.u32 %s22, 1
        %s273 = scalar_lea.sflag [#allocation5], %s272
        %s274 = sand.u32 %s56, 1
        %s275 = smul.addr %s274, 576
        %s276 = scalar_lea.vmem [#allocation4], %s275
        %p277 = pneg %p69
        %p278 = pneg %p66
        %p279 = pneg %p90
        %p280 = pneg %p87
        %p281 = pneg %p111
        %p282 = pneg %p108
        %p283 = pneg %p137
        %p284 = pneg %p134
        %s285 = smul.u32 12, %s22
        %p286 = scmp.lt.s32.totalorder %s285, 47
        %s287 = scalar_select %p286, %s285, 47
        %s288 = smul.addr %s287, 8
        %s289 = scalar_lea.vmem %s4, %s288
        %s290 = smul.u32 12, %s22
        %s291 = smul.u32 12, %s22
        %s292 = smul.u32 12, %s22
        %p293 = scmp.lt.s32.totalorder %s292, 47
        %s294 = scalar_select %p293, %s292, 47
        %s295 = smul.addr %s294, 8
        %s296 = scalar_lea.vmem %s4, %s295
        %s297 = smul.u32 12, %s22
        %v298 = vld [vmem:[%s239] sm:$0xff]
        %v299 = vld [vmem:[%s239 + $0x8] sm:$0xff]
        %v300 = vld [vmem:[%s239 + $0x10] sm:$0xff]
        %v301 = vld [vmem:[%s239 + $0x18] sm:$0xff]
        %v302 = vld [vmem:[%s239 + $0x20] sm:$0xff]
        %v303 = vld [vmem:[%s239 + $0x28] sm:$0xff]
        %v304 = vld [vmem:[%s239 + $0x30] sm:$0xff]
        %v305 = vld [vmem:[%s239 + $0x38] sm:$0xff]
        %v306 = vld [vmem:[%s239 + $0x40] sm:$0xff]
        %v307 = vld [vmem:[%s239 + $0x48] sm:$0xff]
        %v308 = vld [vmem:[%s239 + $0x50] sm:$0xff]
        %v309 = vld [vmem:[%s239 + $0x58] sm:$0xff]
        %v310 = vld [vmem:[%s239 + $0x60] sm:$0xff]
        %v311 = vld [vmem:[%s239 + $0x68] sm:$0xff]
        %v312 = vld [vmem:[%s239 + $0x70] sm:$0xff]
        %v313 = vld [vmem:[%s239 + $0x78] sm:$0xff]
        %v314 = vld [vmem:[%s239 + $0x80] sm:$0xff]
        %v315 = vld [vmem:[%s239 + $0x88] sm:$0xff]
        %v316 = vld [vmem:[%s239 + $0x90] sm:$0xff]
        %v317 = vld [vmem:[%s239 + $0x98] sm:$0xff]
        %v318 = vld [vmem:[%s239 + $0xa0] sm:$0xff]
        %v319 = vld [vmem:[%s239 + $0xa8] sm:$0xff]
        %v320 = vld [vmem:[%s239 + $0xb0] sm:$0xff]
        %v321 = vld [vmem:[%s239 + $0xb8] sm:$0xff]
        %v322 = vld [vmem:[%s239 + $0xc0] sm:$0xff]
        %v323 = vld [vmem:[%s239 + $0xc8] sm:$0xff]
        %v324 = vld [vmem:[%s239 + $0xd0] sm:$0xff]
        %v325 = vld [vmem:[%s239 + $0xd8] sm:$0xff]
        %v326 = vld [vmem:[%s239 + $0xe0] sm:$0xff]
        %v327 = vld [vmem:[%s239 + $0xe8] sm:$0xff]
        %v328 = vld [vmem:[%s239 + $0xf0] sm:$0xff]
        %v329 = vld [vmem:[%s239 + $0xf8] sm:$0xff]
        %v330 = vld [vmem:[%s239 + $0x100] sm:$0xff]
        %v331 = vld [vmem:[%s239 + $0x108] sm:$0xff]
        %v332 = vld [vmem:[%s239 + $0x110] sm:$0xff]
        %v333 = vld [vmem:[%s239 + $0x118] sm:$0xff]
        %v334 = vld [vmem:[%s239 + $0x120] sm:$0xff]
        %v335 = vld [vmem:[%s239 + $0x128] sm:$0xff]
        %v336 = vld [vmem:[%s239 + $0x130] sm:$0xff]
        %v337 = vld [vmem:[%s239 + $0x138] sm:$0xff]
        %v338 = vld [vmem:[%s239 + $0x140] sm:$0xff]
        %v339 = vld [vmem:[%s239 + $0x148] sm:$0xff]
        %v340 = vld [vmem:[%s239 + $0x150] sm:$0xff]
        %v341 = vld [vmem:[%s239 + $0x158] sm:$0xff]
        %v342 = vld [vmem:[%s239 + $0x160] sm:$0xff]
        %v343 = vld [vmem:[%s239 + $0x168] sm:$0xff]
        %v344 = vld [vmem:[%s239 + $0x170] sm:$0xff]
        %v345 = vld [vmem:[%s239 + $0x178] sm:$0xff]
        %v346 = vld [vmem:[%s239 + $0x180] sm:$0xff]
        %v347 = vld [vmem:[%s239 + $0x188] sm:$0xff]
        %v348 = vld [vmem:[%s239 + $0x190] sm:$0xff]
        %v349 = vld [vmem:[%s239 + $0x198] sm:$0xff]
        %v350 = vld [vmem:[%s239 + $0x1a0] sm:$0xff]
        %v351 = vld [vmem:[%s239 + $0x1a8] sm:$0xff]
        %v352 = vld [vmem:[%s239 + $0x1b0] sm:$0xff]
        %v353 = vld [vmem:[%s239 + $0x1b8] sm:$0xff]
        %v354 = vld [vmem:[%s239 + $0x1c0] sm:$0xff]
        %v355 = vld [vmem:[%s239 + $0x1c8] sm:$0xff]
        %v356 = vld [vmem:[%s239 + $0x1d0] sm:$0xff]
        %v357 = vld [vmem:[%s239 + $0x1d8] sm:$0xff]
        %v358 = vld [vmem:[%s239 + $0x1e0] sm:$0xff]
        %v359 = vld [vmem:[%s239 + $0x1e8] sm:$0xff]
        %v360 = vld [vmem:[%s239 + $0x1f0] sm:$0xff]
        %v361 = vld [vmem:[%s239 + $0x1f8] sm:$0xff]
        %v362 = vld [vmem:[%s239 + $0x200] sm:$0xff]
        %v363 = vld [vmem:[%s239 + $0x208] sm:$0xff]
        %v364 = vld [vmem:[%s239 + $0x210] sm:$0xff]
        %v365 = vld [vmem:[%s239 + $0x218] sm:$0xff]
        %v366 = vld [vmem:[%s239 + $0x220] sm:$0xff]
        %v367 = vld [vmem:[%s239 + $0x228] sm:$0xff]
        %v368 = vld [vmem:[%s239 + $0x230] sm:$0xff]
        %v369 = vld [vmem:[%s239 + $0x238] sm:$0xff]
        %v370 = vld [vmem:[%s249] sm:$0xff]
        %v371 = vld [vmem:[%s249 + $0x8] sm:$0xff]
        %v372 = vld [vmem:[%s249 + $0x10] sm:$0xff]
        %v373 = vld [vmem:[%s249 + $0x18] sm:$0xff]
        %v374 = vld [vmem:[%s249 + $0x20] sm:$0xff]
        %v375 = vld [vmem:[%s249 + $0x28] sm:$0xff]
        %v376 = vld [vmem:[%s249 + $0x30] sm:$0xff]
        %v377 = vld [vmem:[%s249 + $0x38] sm:$0xff]
        %v378 = vld [vmem:[%s249 + $0x40] sm:$0xff]
        %v379 = vld [vmem:[%s249 + $0x48] sm:$0xff]
        %v380 = vld [vmem:[%s249 + $0x50] sm:$0xff]
        %v381 = vld [vmem:[%s249 + $0x58] sm:$0xff]
        %v382 = vld [vmem:[%s249 + $0x60] sm:$0xff]
        %v383 = vld [vmem:[%s249 + $0x68] sm:$0xff]
        %v384 = vld [vmem:[%s249 + $0x70] sm:$0xff]
        %v385 = vld [vmem:[%s249 + $0x78] sm:$0xff]
        %v386 = vld [vmem:[%s249 + $0x80] sm:$0xff]
        %v387 = vld [vmem:[%s249 + $0x88] sm:$0xff]
        %v388 = vld [vmem:[%s249 + $0x90] sm:$0xff]
        %v389 = vld [vmem:[%s249 + $0x98] sm:$0xff]
        %v390 = vld [vmem:[%s249 + $0xa0] sm:$0xff]
        %v391 = vld [vmem:[%s249 + $0xa8] sm:$0xff]
        %v392 = vld [vmem:[%s249 + $0xb0] sm:$0xff]
        %v393 = vld [vmem:[%s249 + $0xb8] sm:$0xff]
        %v394 = vld [vmem:[%s249 + $0xc0] sm:$0xff]
        %v395 = vld [vmem:[%s249 + $0xc8] sm:$0xff]
        %v396 = vld [vmem:[%s249 + $0xd0] sm:$0xff]
        %v397 = vld [vmem:[%s249 + $0xd8] sm:$0xff]
        %v398 = vld [vmem:[%s249 + $0xe0] sm:$0xff]
        %v399 = vld [vmem:[%s249 + $0xe8] sm:$0xff]
        %v400 = vld [vmem:[%s249 + $0xf0] sm:$0xff]
        %v401 = vld [vmem:[%s249 + $0xf8] sm:$0xff]
        %v402 = vld [vmem:[%s249 + $0x100] sm:$0xff]
        %v403 = vld [vmem:[%s249 + $0x108] sm:$0xff]
        %v404 = vld [vmem:[%s249 + $0x110] sm:$0xff]
        %v405 = vld [vmem:[%s249 + $0x118] sm:$0xff]
        %v406 = vld [vmem:[%s249 + $0x120] sm:$0xff]
        %v407 = vld [vmem:[%s249 + $0x128] sm:$0xff]
        %v408 = vld [vmem:[%s249 + $0x130] sm:$0xff]
        %v409 = vld [vmem:[%s249 + $0x138] sm:$0xff]
        %v410 = vld [vmem:[%s249 + $0x140] sm:$0xff]
        %v411 = vld [vmem:[%s249 + $0x148] sm:$0xff]
        %v412 = vld [vmem:[%s249 + $0x150] sm:$0xff]
        %v413 = vld [vmem:[%s249 + $0x158] sm:$0xff]
        %v414 = vld [vmem:[%s249 + $0x160] sm:$0xff]
        %v415 = vld [vmem:[%s249 + $0x168] sm:$0xff]
        %v416 = vld [vmem:[%s249 + $0x170] sm:$0xff]
        %v417 = vld [vmem:[%s249 + $0x178] sm:$0xff]
        %v418 = vld [vmem:[%s249 + $0x180] sm:$0xff]
        %v419 = vld [vmem:[%s249 + $0x188] sm:$0xff]
        %v420 = vld [vmem:[%s249 + $0x190] sm:$0xff]
        %v421 = vld [vmem:[%s249 + $0x198] sm:$0xff]
        %v422 = vld [vmem:[%s249 + $0x1a0] sm:$0xff]
        %v423 = vld [vmem:[%s249 + $0x1a8] sm:$0xff]
        %v424 = vld [vmem:[%s249 + $0x1b0] sm:$0xff]
        %v425 = vld [vmem:[%s249 + $0x1b8] sm:$0xff]
        %v426 = vld [vmem:[%s249 + $0x1c0] sm:$0xff]
        %v427 = vld [vmem:[%s249 + $0x1c8] sm:$0xff]
        %v428 = vld [vmem:[%s249 + $0x1d0] sm:$0xff]
        %v429 = vld [vmem:[%s249 + $0x1d8] sm:$0xff]
        %v430 = vld [vmem:[%s249 + $0x1e0] sm:$0xff]
        %v431 = vld [vmem:[%s249 + $0x1e8] sm:$0xff]
        %v432 = vld [vmem:[%s249 + $0x1f0] sm:$0xff]
        %v433 = vld [vmem:[%s249 + $0x1f8] sm:$0xff]
        %v434 = vld [vmem:[%s249 + $0x200] sm:$0xff]
        %v435 = vld [vmem:[%s249 + $0x208] sm:$0xff]
        %v436 = vld [vmem:[%s249 + $0x210] sm:$0xff]
        %v437 = vld [vmem:[%s249 + $0x218] sm:$0xff]
        %v438 = vld [vmem:[%s249 + $0x220] sm:$0xff]
        %v439 = vld [vmem:[%s249 + $0x228] sm:$0xff]
        %v440 = vld [vmem:[%s249 + $0x230] sm:$0xff]
        %v441 = vld [vmem:[%s249 + $0x238] sm:$0xff]
        %v442 = vadd.f32 %v298, %v370
        %v443 = vadd.f32 %v299, %v371
        %v444 = vadd.f32 %v300, %v372
        %v445 = vadd.f32 %v301, %v373
        %v446 = vadd.f32 %v302, %v374
        %v447 = vadd.f32 %v303, %v375
        %v448 = vadd.f32 %v304, %v376
        %v449 = vadd.f32 %v305, %v377
        %v450 = vadd.f32 %v306, %v378
        %v451 = vadd.f32 %v307, %v379
        %v452 = vadd.f32 %v308, %v380
        %v453 = vadd.f32 %v309, %v381
        %v454 = vadd.f32 %v310, %v382
        %v455 = vadd.f32 %v311, %v383
        %v456 = vadd.f32 %v312, %v384
        %v457 = vadd.f32 %v313, %v385
        %v458 = vadd.f32 %v314, %v386
        %v459 = vadd.f32 %v315, %v387
        %v460 = vadd.f32 %v316, %v388
        %v461 = vadd.f32 %v317, %v389
        %v462 = vadd.f32 %v318, %v390
        %v463 = vadd.f32 %v319, %v391
        %v464 = vadd.f32 %v320, %v392
        %v465 = vadd.f32 %v321, %v393
        %v466 = vadd.f32 %v322, %v394
        %v467 = vadd.f32 %v323, %v395
        %v468 = vadd.f32 %v324, %v396
        %v469 = vadd.f32 %v325, %v397
        %v470 = vadd.f32 %v326, %v398
        %v471 = vadd.f32 %v327, %v399
        %v472 = vadd.f32 %v328, %v400
        %v473 = vadd.f32 %v329, %v401
        %v474 = vadd.f32 %v330, %v402
        %v475 = vadd.f32 %v331, %v403
        %v476 = vadd.f32 %v332, %v404
        %v477 = vadd.f32 %v333, %v405
        %v478 = vadd.f32 %v334, %v406
        %v479 = vadd.f32 %v335, %v407
        %v480 = vadd.f32 %v336, %v408
        %v481 = vadd.f32 %v337, %v409
        %v482 = vadd.f32 %v338, %v410
        %v483 = vadd.f32 %v339, %v411
        %v484 = vadd.f32 %v340, %v412
        %v485 = vadd.f32 %v341, %v413
        %v486 = vadd.f32 %v342, %v414
        %v487 = vadd.f32 %v343, %v415
        %v488 = vadd.f32 %v344, %v416
        %v489 = vadd.f32 %v345, %v417
        %v490 = vadd.f32 %v346, %v418
        %v491 = vadd.f32 %v347, %v419
        %v492 = vadd.f32 %v348, %v420
        %v493 = vadd.f32 %v349, %v421
        %v494 = vadd.f32 %v350, %v422
        %v495 = vadd.f32 %v351, %v423
        %v496 = vadd.f32 %v352, %v424
        %v497 = vadd.f32 %v353, %v425
        %v498 = vadd.f32 %v354, %v426
        %v499 = vadd.f32 %v355, %v427
        %v500 = vadd.f32 %v356, %v428
        %v501 = vadd.f32 %v357, %v429
        %v502 = vadd.f32 %v358, %v430
        %v503 = vadd.f32 %v359, %v431
        %v504 = vadd.f32 %v360, %v432
        %v505 = vadd.f32 %v361, %v433
        %v506 = vadd.f32 %v362, %v434
        %v507 = vadd.f32 %v363, %v435
        %v508 = vadd.f32 %v364, %v436
        %v509 = vadd.f32 %v365, %v437
        %v510 = vadd.f32 %v366, %v438
        %v511 = vadd.f32 %v367, %v439
        %v512 = vadd.f32 %v368, %v440
        %v513 = vadd.f32 %v369, %v441
        %v514 = vadd.f32 %v442, %v443
        %v515 = vadd.f32 %v514, %v444
        %v516 = vadd.f32 %v515, %v445
        %v517 = vadd.f32 %v516, %v446
        %v518 = vadd.f32 %v517, %v447
        %519 = vadd.xlane.f32.xlu0 %v518
        %v520 = vpop.xlane.xlu0 %519
        %v521 = vadd.f32 %v448, %v449
        %v522 = vadd.f32 %v521, %v450
        %v523 = vadd.f32 %v522, %v451
        %v524 = vadd.f32 %v523, %v452
        %v525 = vadd.f32 %v524, %v453
        %526 = vadd.xlane.f32.xlu0 %v525
        %v527 = vpop.xlane.xlu0 %526
        %v528 = vadd.f32 %v454, %v455
        %v529 = vadd.f32 %v528, %v456
        %v530 = vadd.f32 %v529, %v457
        %v531 = vadd.f32 %v530, %v458
        %v532 = vadd.f32 %v531, %v459
        %533 = vadd.xlane.f32.xlu0 %v532
        %v534 = vpop.xlane.xlu0 %533
        %v535 = vadd.f32 %v460, %v461
        %v536 = vadd.f32 %v535, %v462
        %v537 = vadd.f32 %v536, %v463
        %v538 = vadd.f32 %v537, %v464
        %v539 = vadd.f32 %v538, %v465
        %540 = vadd.xlane.f32.xlu0 %v539
        %v541 = vpop.xlane.xlu0 %540
        %v542 = vadd.f32 %v466, %v467
        %v543 = vadd.f32 %v542, %v468
        %v544 = vadd.f32 %v543, %v469
        %v545 = vadd.f32 %v544, %v470
        %v546 = vadd.f32 %v545, %v471
        %547 = vadd.xlane.f32.xlu0 %v546
        %v548 = vpop.xlane.xlu0 %547
        %v549 = vadd.f32 %v472, %v473
        %v550 = vadd.f32 %v549, %v474
        %v551 = vadd.f32 %v550, %v475
        %v552 = vadd.f32 %v551, %v476
        %v553 = vadd.f32 %v552, %v477
        %554 = vadd.xlane.f32.xlu0 %v553
        %v555 = vpop.xlane.xlu0 %554
        %v556 = vadd.f32 %v478, %v479
        %v557 = vadd.f32 %v556, %v480
        %v558 = vadd.f32 %v557, %v481
        %v559 = vadd.f32 %v558, %v482
        %v560 = vadd.f32 %v559, %v483
        %561 = vadd.xlane.f32.xlu0 %v560
        %v562 = vpop.xlane.xlu0 %561
        %v563 = vadd.f32 %v484, %v485
        %v564 = vadd.f32 %v563, %v486
        %v565 = vadd.f32 %v564, %v487
        %v566 = vadd.f32 %v565, %v488
        %v567 = vadd.f32 %v566, %v489
        %568 = vadd.xlane.f32.xlu0 %v567
        %v569 = vpop.xlane.xlu0 %568
        %v570 = vadd.f32 %v490, %v491
        %v571 = vadd.f32 %v570, %v492
        %v572 = vadd.f32 %v571, %v493
        %v573 = vadd.f32 %v572, %v494
        %v574 = vadd.f32 %v573, %v495
        %575 = vadd.xlane.f32.xlu0 %v574
        %v576 = vpop.xlane.xlu0 %575
        %v577 = vadd.f32 %v496, %v497
        %v578 = vadd.f32 %v577, %v498
        %v579 = vadd.f32 %v578, %v499
        %v580 = vadd.f32 %v579, %v500
        %v581 = vadd.f32 %v580, %v501
        %582 = vadd.xlane.f32.xlu0 %v581
        %v583 = vpop.xlane.xlu0 %582
        %v584 = vadd.f32 %v502, %v503
        %v585 = vadd.f32 %v584, %v504
        %v586 = vadd.f32 %v585, %v505
        %v587 = vadd.f32 %v586, %v506
        %v588 = vadd.f32 %v587, %v507
        %589 = vadd.xlane.f32.xlu0 %v588
        %v590 = vpop.xlane.xlu0 %589
        %v591 = vadd.f32 %v508, %v509
        %v592 = vadd.f32 %v591, %v510
        %v593 = vadd.f32 %v592, %v511
        %v594 = vadd.f32 %v593, %v512
        %v595 = vadd.f32 %v594, %v513
        %596 = vadd.xlane.f32.xlu0 %v595
        %v597 = vpop.xlane.xlu0 %596
        %v598 = vrcp.pop 768.0
        %v599 = vmul.f32 768.0, %v598
        %v600 = vsub.f32 1.0, %v599
        %v601 = vmul.f32 %v598, %v600
        %v602 = vadd.f32 %v598, %v601
        %vm603 = vweird.f32 %v598
        %v604 = vsel %vm603, %v598, %v602
        %v605 = vmul.f32 %v520, %v604
        %v606 = vmul.f32 %v527, %v604
        %v607 = vmul.f32 %v534, %v604
        %v608 = vmul.f32 %v541, %v604
        %v609 = vmul.f32 %v548, %v604
        %v610 = vmul.f32 %v555, %v604
        %v611 = vmul.f32 %v562, %v604
        %v612 = vmul.f32 %v569, %v604
        %v613 = vmul.f32 %v576, %v604
        %v614 = vmul.f32 %v583, %v604
        %v615 = vmul.f32 %v590, %v604
        %v616 = vmul.f32 %v597, %v604
        %v617 = vmul.f32 %v442, %v442
        %v618 = vmul.f32 %v443, %v443
        %v619 = vmul.f32 %v444, %v444
        %v620 = vmul.f32 %v445, %v445
        %v621 = vmul.f32 %v446, %v446
        %v622 = vmul.f32 %v447, %v447
        %v623 = vmul.f32 %v448, %v448
        %v624 = vmul.f32 %v449, %v449
        %v625 = vmul.f32 %v450, %v450
        %v626 = vmul.f32 %v451, %v451
        %v627 = vmul.f32 %v452, %v452
        %v628 = vmul.f32 %v453, %v453
        %v629 = vmul.f32 %v454, %v454
        %v630 = vmul.f32 %v455, %v455
        %v631 = vmul.f32 %v456, %v456
        %v632 = vmul.f32 %v457, %v457
        %v633 = vmul.f32 %v458, %v458
        %v634 = vmul.f32 %v459, %v459
        %v635 = vmul.f32 %v460, %v460
        %v636 = vmul.f32 %v461, %v461
        %v637 = vmul.f32 %v462, %v462
        %v638 = vmul.f32 %v463, %v463
        %v639 = vmul.f32 %v464, %v464
        %v640 = vmul.f32 %v465, %v465
        %v641 = vmul.f32 %v466, %v466
        %v642 = vmul.f32 %v467, %v467
        %v643 = vmul.f32 %v468, %v468
        %v644 = vmul.f32 %v469, %v469
        %v645 = vmul.f32 %v470, %v470
        %v646 = vmul.f32 %v471, %v471
        %v647 = vmul.f32 %v472, %v472
        %v648 = vmul.f32 %v473, %v473
        %v649 = vmul.f32 %v474, %v474
        %v650 = vmul.f32 %v475, %v475
        %v651 = vmul.f32 %v476, %v476
        %v652 = vmul.f32 %v477, %v477
        %v653 = vmul.f32 %v478, %v478
        %v654 = vmul.f32 %v479, %v479
        %v655 = vmul.f32 %v480, %v480
        %v656 = vmul.f32 %v481, %v481
        %v657 = vmul.f32 %v482, %v482
        %v658 = vmul.f32 %v483, %v483
        %v659 = vmul.f32 %v484, %v484
        %v660 = vmul.f32 %v485, %v485
        %v661 = vmul.f32 %v486, %v486
        %v662 = vmul.f32 %v487, %v487
        %v663 = vmul.f32 %v488, %v488
        %v664 = vmul.f32 %v489, %v489
        %v665 = vmul.f32 %v490, %v490
        %v666 = vmul.f32 %v491, %v491
        %v667 = vmul.f32 %v492, %v492
        %v668 = vmul.f32 %v493, %v493
        %v669 = vmul.f32 %v494, %v494
        %v670 = vmul.f32 %v495, %v495
        %v671 = vmul.f32 %v496, %v496
        %v672 = vmul.f32 %v497, %v497
        %v673 = vmul.f32 %v498, %v498
        %v674 = vmul.f32 %v499, %v499
        %v675 = vmul.f32 %v500, %v500
        %v676 = vmul.f32 %v501, %v501
        %v677 = vmul.f32 %v502, %v502
        %v678 = vmul.f32 %v503, %v503
        %v679 = vmul.f32 %v504, %v504
        %v680 = vmul.f32 %v505, %v505
        %v681 = vmul.f32 %v506, %v506
        %v682 = vmul.f32 %v507, %v507
        %v683 = vmul.f32 %v508, %v508
        %v684 = vmul.f32 %v509, %v509
        %v685 = vmul.f32 %v510, %v510
        %v686 = vmul.f32 %v511, %v511
        %v687 = vmul.f32 %v512, %v512
        %v688 = vmul.f32 %v513, %v513
        %v689 = vadd.f32 %v617, %v618
        %v690 = vadd.f32 %v689, %v619
        %v691 = vadd.f32 %v690, %v620
        %v692 = vadd.f32 %v691, %v621
        %v693 = vadd.f32 %v692, %v622
        %694 = vadd.xlane.f32.xlu0 %v693
        %v695 = vpop.xlane.xlu0 %694
        %v696 = vadd.f32 %v623, %v624
        %v697 = vadd.f32 %v696, %v625
        %v698 = vadd.f32 %v697, %v626
        %v699 = vadd.f32 %v698, %v627
        %v700 = vadd.f32 %v699, %v628
        %701 = vadd.xlane.f32.xlu0 %v700
        %v702 = vpop.xlane.xlu0 %701
        %v703 = vadd.f32 %v629, %v630
        %v704 = vadd.f32 %v703, %v631
        %v705 = vadd.f32 %v704, %v632
        %v706 = vadd.f32 %v705, %v633
        %v707 = vadd.f32 %v706, %v634
        %708 = vadd.xlane.f32.xlu0 %v707
        %v709 = vpop.xlane.xlu0 %708
        %v710 = vadd.f32 %v635, %v636
        %v711 = vadd.f32 %v710, %v637
        %v712 = vadd.f32 %v711, %v638
        %v713 = vadd.f32 %v712, %v639
        %v714 = vadd.f32 %v713, %v640
        %715 = vadd.xlane.f32.xlu0 %v714
        %v716 = vpop.xlane.xlu0 %715
        %v717 = vadd.f32 %v641, %v642
        %v718 = vadd.f32 %v717, %v643
        %v719 = vadd.f32 %v718, %v644
        %v720 = vadd.f32 %v719, %v645
        %v721 = vadd.f32 %v720, %v646
        %722 = vadd.xlane.f32.xlu0 %v721
        %v723 = vpop.xlane.xlu0 %722
        %v724 = vadd.f32 %v647, %v648
        %v725 = vadd.f32 %v724, %v649
        %v726 = vadd.f32 %v725, %v650
        %v727 = vadd.f32 %v726, %v651
        %v728 = vadd.f32 %v727, %v652
        %729 = vadd.xlane.f32.xlu0 %v728
        %v730 = vpop.xlane.xlu0 %729
        %v731 = vadd.f32 %v653, %v654
        %v732 = vadd.f32 %v731, %v655
        %v733 = vadd.f32 %v732, %v656
        %v734 = vadd.f32 %v733, %v657
        %v735 = vadd.f32 %v734, %v658
        %736 = vadd.xlane.f32.xlu0 %v735
        %v737 = vpop.xlane.xlu0 %736
        %v738 = vadd.f32 %v659, %v660
        %v739 = vadd.f32 %v738, %v661
        %v740 = vadd.f32 %v739, %v662
        %v741 = vadd.f32 %v740, %v663
        %v742 = vadd.f32 %v741, %v664
        %743 = vadd.xlane.f32.xlu0 %v742
        %v744 = vpop.xlane.xlu0 %743
        %v745 = vadd.f32 %v665, %v666
        %v746 = vadd.f32 %v745, %v667
        %v747 = vadd.f32 %v746, %v668
        %v748 = vadd.f32 %v747, %v669
        %v749 = vadd.f32 %v748, %v670
        %750 = vadd.xlane.f32.xlu0 %v749
        %v751 = vpop.xlane.xlu0 %750
        %v752 = vadd.f32 %v671, %v672
        %v753 = vadd.f32 %v752, %v673
        %v754 = vadd.f32 %v753, %v674
        %v755 = vadd.f32 %v754, %v675
        %v756 = vadd.f32 %v755, %v676
        %757 = vadd.xlane.f32.xlu0 %v756
        %v758 = vpop.xlane.xlu0 %757
        %v759 = vadd.f32 %v677, %v678
        %v760 = vadd.f32 %v759, %v679
        %v761 = vadd.f32 %v760, %v680
        %v762 = vadd.f32 %v761, %v681
        %v763 = vadd.f32 %v762, %v682
        %764 = vadd.xlane.f32.xlu0 %v763
        %v765 = vpop.xlane.xlu0 %764
        %v766 = vadd.f32 %v683, %v684
        %v767 = vadd.f32 %v766, %v685
        %v768 = vadd.f32 %v767, %v686
        %v769 = vadd.f32 %v768, %v687
        %v770 = vadd.f32 %v769, %v688
        %771 = vadd.xlane.f32.xlu0 %v770
        %v772 = vpop.xlane.xlu0 %771
        %v773 = vmul.f32 %v695, %v604
        %v774 = vmul.f32 %v702, %v604
        %v775 = vmul.f32 %v709, %v604
        %v776 = vmul.f32 %v716, %v604
        %v777 = vmul.f32 %v723, %v604
        %v778 = vmul.f32 %v730, %v604
        %v779 = vmul.f32 %v737, %v604
        %v780 = vmul.f32 %v744, %v604
        %v781 = vmul.f32 %v751, %v604
        %v782 = vmul.f32 %v758, %v604
        %v783 = vmul.f32 %v765, %v604
        %v784 = vmul.f32 %v772, %v604
        %v785 = vmul.f32 %v605, %v605
        %v786 = vmul.f32 %v606, %v606
        %v787 = vmul.f32 %v607, %v607
        %v788 = vmul.f32 %v608, %v608
        %v789 = vmul.f32 %v609, %v609
        %v790 = vmul.f32 %v610, %v610
        %v791 = vmul.f32 %v611, %v611
        %v792 = vmul.f32 %v612, %v612
        %v793 = vmul.f32 %v613, %v613
        %v794 = vmul.f32 %v614, %v614
        %v795 = vmul.f32 %v615, %v615
        %v796 = vmul.f32 %v616, %v616
        %v797 = vsub.f32 %v773, %v785
        %v798 = vsub.f32 %v774, %v786
        %v799 = vsub.f32 %v775, %v787
        %v800 = vsub.f32 %v776, %v788
        %v801 = vsub.f32 %v777, %v789
        %v802 = vsub.f32 %v778, %v790
        %v803 = vsub.f32 %v779, %v791
        %v804 = vsub.f32 %v780, %v792
        %v805 = vsub.f32 %v781, %v793
        %v806 = vsub.f32 %v782, %v794
        %v807 = vsub.f32 %v783, %v795
        %v808 = vsub.f32 %v784, %v796
        %v809 = vadd.f32 %v797, 1e-12
        %v810 = vadd.f32 %v798, 1e-12
        %v811 = vadd.f32 %v799, 1e-12
        %v812 = vadd.f32 %v800, 1e-12
        %v813 = vadd.f32 %v801, 1e-12
        %v814 = vadd.f32 %v802, 1e-12
        %v815 = vadd.f32 %v803, 1e-12
        %v816 = vadd.f32 %v804, 1e-12
        %v817 = vadd.f32 %v805, 1e-12
        %v818 = vadd.f32 %v806, 1e-12
        %v819 = vadd.f32 %v807, 1e-12
        %v820 = vadd.f32 %v808, 1e-12
        %v821 = vrsqrt.pop %v809
        %v822 = vmul.f32 %v821, %v809
        %v823 = vmul.f32 %v822, %v821
        %v824 = vmul.f32 0.5, %v823
        %v825 = vsub.f32 1.5, %v824
        %v826 = vmul.f32 %v821, %v825
        %vm827 = vweird.f32 %v809
        %vm828 = vweird.f32 %v821
        %vm829 = vmor %vm827, %vm828
        %v830 = vsel %vm829, %v821, %v826
        %v831 = vrsqrt.pop %v810
        %v832 = vmul.f32 %v831, %v810
        %v833 = vmul.f32 %v832, %v831
        %v834 = vmul.f32 0.5, %v833
        %v835 = vsub.f32 1.5, %v834
        %v836 = vmul.f32 %v831, %v835
        %vm837 = vweird.f32 %v810
        %vm838 = vweird.f32 %v831
        %vm839 = vmor %vm837, %vm838
        %v840 = vsel %vm839, %v831, %v836
        %v841 = vrsqrt.pop %v811
        %v842 = vmul.f32 %v841, %v811
        %v843 = vmul.f32 %v842, %v841
        %v844 = vmul.f32 0.5, %v843
        %v845 = vsub.f32 1.5, %v844
        %v846 = vmul.f32 %v841, %v845
        %vm847 = vweird.f32 %v811
        %vm848 = vweird.f32 %v841
        %vm849 = vmor %vm847, %vm848
        %v850 = vsel %vm849, %v841, %v846
        %v851 = vrsqrt.pop %v812
        %v852 = vmul.f32 %v851, %v812
        %v853 = vmul.f32 %v852, %v851
        %v854 = vmul.f32 0.5, %v853
        %v855 = vsub.f32 1.5, %v854
        %v856 = vmul.f32 %v851, %v855
        %vm857 = vweird.f32 %v812
        %vm858 = vweird.f32 %v851
        %vm859 = vmor %vm857, %vm858
        %v860 = vsel %vm859, %v851, %v856
        %v861 = vrsqrt.pop %v813
        %v862 = vmul.f32 %v861, %v813
        %v863 = vmul.f32 %v862, %v861
        %v864 = vmul.f32 0.5, %v863
        %v865 = vsub.f32 1.5, %v864
        %v866 = vmul.f32 %v861, %v865
        %vm867 = vweird.f32 %v813
        %vm868 = vweird.f32 %v861
        %vm869 = vmor %vm867, %vm868
        %v870 = vsel %vm869, %v861, %v866
        %v871 = vrsqrt.pop %v814
        %v872 = vmul.f32 %v871, %v814
        %v873 = vmul.f32 %v872, %v871
        %v874 = vmul.f32 0.5, %v873
        %v875 = vsub.f32 1.5, %v874
        %v876 = vmul.f32 %v871, %v875
        %vm877 = vweird.f32 %v814
        %vm878 = vweird.f32 %v871
        %vm879 = vmor %vm877, %vm878
        %v880 = vsel %vm879, %v871, %v876
        %v881 = vrsqrt.pop %v815
        %v882 = vmul.f32 %v881, %v815
        %v883 = vmul.f32 %v882, %v881
        %v884 = vmul.f32 0.5, %v883
        %v885 = vsub.f32 1.5, %v884
        %v886 = vmul.f32 %v881, %v885
        %vm887 = vweird.f32 %v815
        %vm888 = vweird.f32 %v881
        %vm889 = vmor %vm887, %vm888
        %v890 = vsel %vm889, %v881, %v886
        %v891 = vrsqrt.pop %v816
        %v892 = vmul.f32 %v891, %v816
        %v893 = vmul.f32 %v892, %v891
        %v894 = vmul.f32 0.5, %v893
        %v895 = vsub.f32 1.5, %v894
        %v896 = vmul.f32 %v891, %v895
        %vm897 = vweird.f32 %v816
        %vm898 = vweird.f32 %v891
        %vm899 = vmor %vm897, %vm898
        %v900 = vsel %vm899, %v891, %v896
        %v901 = vrsqrt.pop %v817
        %v902 = vmul.f32 %v901, %v817
        %v903 = vmul.f32 %v902, %v901
        %v904 = vmul.f32 0.5, %v903
        %v905 = vsub.f32 1.5, %v904
        %v906 = vmul.f32 %v901, %v905
        %vm907 = vweird.f32 %v817
        %vm908 = vweird.f32 %v901
        %vm909 = vmor %vm907, %vm908
        %v910 = vsel %vm909, %v901, %v906
        %v911 = vrsqrt.pop %v818
        %v912 = vmul.f32 %v911, %v818
        %v913 = vmul.f32 %v912, %v911
        %v914 = vmul.f32 0.5, %v913
        %v915 = vsub.f32 1.5, %v914
        %v916 = vmul.f32 %v911, %v915
        %vm917 = vweird.f32 %v818
        %vm918 = vweird.f32 %v911
        %vm919 = vmor %vm917, %vm918
        %v920 = vsel %vm919, %v911, %v916
        %v921 = vrsqrt.pop %v819
        %v922 = vmul.f32 %v921, %v819
        %v923 = vmul.f32 %v922, %v921
        %v924 = vmul.f32 0.5, %v923
        %v925 = vsub.f32 1.5, %v924
        %v926 = vmul.f32 %v921, %v925
        %vm927 = vweird.f32 %v819
        %vm928 = vweird.f32 %v921
        %vm929 = vmor %vm927, %vm928
        %v930 = vsel %vm929, %v921, %v926
        %v931 = vrsqrt.pop %v820
        %v932 = vmul.f32 %v931, %v820
        %v933 = vmul.f32 %v932, %v931
        %v934 = vmul.f32 0.5, %v933
        %v935 = vsub.f32 1.5, %v934
        %v936 = vmul.f32 %v931, %v935
        %vm937 = vweird.f32 %v820
        %vm938 = vweird.f32 %v931
        %vm939 = vmor %vm937, %vm938
        %v940 = vsel %vm939, %v931, %v936
        %v941 = vsub.f32 %v442, %v605
        %v942 = vsub.f32 %v443, %v605
        %v943 = vsub.f32 %v444, %v605
        %v944 = vsub.f32 %v445, %v605
        %v945 = vsub.f32 %v446, %v605
        %v946 = vsub.f32 %v447, %v605
        %v947 = vsub.f32 %v448, %v606
        %v948 = vsub.f32 %v449, %v606
        %v949 = vsub.f32 %v450, %v606
        %v950 = vsub.f32 %v451, %v606
        %v951 = vsub.f32 %v452, %v606
        %v952 = vsub.f32 %v453, %v606
        %v953 = vsub.f32 %v454, %v607
        %v954 = vsub.f32 %v455, %v607
        %v955 = vsub.f32 %v456, %v607
        %v956 = vsub.f32 %v457, %v607
        %v957 = vsub.f32 %v458, %v607
        %v958 = vsub.f32 %v459, %v607
        %v959 = vsub.f32 %v460, %v608
        %v960 = vsub.f32 %v461, %v608
        %v961 = vsub.f32 %v462, %v608
        %v962 = vsub.f32 %v463, %v608
        %v963 = vsub.f32 %v464, %v608
        %v964 = vsub.f32 %v465, %v608
        %v965 = vsub.f32 %v466, %v609
        %v966 = vsub.f32 %v467, %v609
        %v967 = vsub.f32 %v468, %v609
        %v968 = vsub.f32 %v469, %v609
        %v969 = vsub.f32 %v470, %v609
        %v970 = vsub.f32 %v471, %v609
        %v971 = vsub.f32 %v472, %v610
        %v972 = vsub.f32 %v473, %v610
        %v973 = vsub.f32 %v474, %v610
        %v974 = vsub.f32 %v475, %v610
        %v975 = vsub.f32 %v476, %v610
        %v976 = vsub.f32 %v477, %v610
        %v977 = vsub.f32 %v478, %v611
        %v978 = vsub.f32 %v479, %v611
        %v979 = vsub.f32 %v480, %v611
        %v980 = vsub.f32 %v481, %v611
        %v981 = vsub.f32 %v482, %v611
        %v982 = vsub.f32 %v483, %v611
        %v983 = vsub.f32 %v484, %v612
        %v984 = vsub.f32 %v485, %v612
        %v985 = vsub.f32 %v486, %v612
        %v986 = vsub.f32 %v487, %v612
        %v987 = vsub.f32 %v488, %v612
        %v988 = vsub.f32 %v489, %v612
        %v989 = vsub.f32 %v490, %v613
        %v990 = vsub.f32 %v491, %v613
        %v991 = vsub.f32 %v492, %v613
        %v992 = vsub.f32 %v493, %v613
        %v993 = vsub.f32 %v494, %v613
        %v994 = vsub.f32 %v495, %v613
        %v995 = vsub.f32 %v496, %v614
        %v996 = vsub.f32 %v497, %v614
        %v997 = vsub.f32 %v498, %v614
        %v998 = vsub.f32 %v499, %v614
        %v999 = vsub.f32 %v500, %v614
        %v1000 = vsub.f32 %v501, %v614
        %v1001 = vsub.f32 %v502, %v615
        %v1002 = vsub.f32 %v503, %v615
        %v1003 = vsub.f32 %v504, %v615
        %v1004 = vsub.f32 %v505, %v615
        %v1005 = vsub.f32 %v506, %v615
        %v1006 = vsub.f32 %v507, %v615
        %v1007 = vsub.f32 %v508, %v616
        %v1008 = vsub.f32 %v509, %v616
        %v1009 = vsub.f32 %v510, %v616
        %v1010 = vsub.f32 %v511, %v616
        %v1011 = vsub.f32 %v512, %v616
        %v1012 = vsub.f32 %v513, %v616
        %v1013 = vmul.f32 %v941, %v830
        %v1014 = vmul.f32 %v942, %v830
        %v1015 = vmul.f32 %v943, %v830
        %v1016 = vmul.f32 %v944, %v830
        %v1017 = vmul.f32 %v945, %v830
        %v1018 = vmul.f32 %v946, %v830
        %v1019 = vmul.f32 %v947, %v840
        %v1020 = vmul.f32 %v948, %v840
        %v1021 = vmul.f32 %v949, %v840
        %v1022 = vmul.f32 %v950, %v840
        %v1023 = vmul.f32 %v951, %v840
        %v1024 = vmul.f32 %v952, %v840
        %v1025 = vmul.f32 %v953, %v850
        %v1026 = vmul.f32 %v954, %v850
        %v1027 = vmul.f32 %v955, %v850
        %v1028 = vmul.f32 %v956, %v850
        %v1029 = vmul.f32 %v957, %v850
        %v1030 = vmul.f32 %v958, %v850
        %v1031 = vmul.f32 %v959, %v860
        %v1032 = vmul.f32 %v960, %v860
        %v1033 = vmul.f32 %v961, %v860
        %v1034 = vmul.f32 %v962, %v860
        %v1035 = vmul.f32 %v963, %v860
        %v1036 = vmul.f32 %v964, %v860
        %v1037 = vmul.f32 %v965, %v870
        %v1038 = vmul.f32 %v966, %v870
        %v1039 = vmul.f32 %v967, %v870
        %v1040 = vmul.f32 %v968, %v870
        %v1041 = vmul.f32 %v969, %v870
        %v1042 = vmul.f32 %v970, %v870
        %v1043 = vmul.f32 %v971, %v880
        %v1044 = vmul.f32 %v972, %v880
        %v1045 = vmul.f32 %v973, %v880
        %v1046 = vmul.f32 %v974, %v880
        %v1047 = vmul.f32 %v975, %v880
        %v1048 = vmul.f32 %v976, %v880
        %v1049 = vmul.f32 %v977, %v890
        %v1050 = vmul.f32 %v978, %v890
        %v1051 = vmul.f32 %v979, %v890
        %v1052 = vmul.f32 %v980, %v890
        %v1053 = vmul.f32 %v981, %v890
        %v1054 = vmul.f32 %v982, %v890
        %v1055 = vmul.f32 %v983, %v900
        %v1056 = vmul.f32 %v984, %v900
        %v1057 = vmul.f32 %v985, %v900
        %v1058 = vmul.f32 %v986, %v900
        %v1059 = vmul.f32 %v987, %v900
        %v1060 = vmul.f32 %v988, %v900
        %v1061 = vmul.f32 %v989, %v910
        %v1062 = vmul.f32 %v990, %v910
        %v1063 = vmul.f32 %v991, %v910
        %v1064 = vmul.f32 %v992, %v910
        %v1065 = vmul.f32 %v993, %v910
        %v1066 = vmul.f32 %v994, %v910
        %v1067 = vmul.f32 %v995, %v920
        %v1068 = vmul.f32 %v996, %v920
        %v1069 = vmul.f32 %v997, %v920
        %v1070 = vmul.f32 %v998, %v920
        %v1071 = vmul.f32 %v999, %v920
        %v1072 = vmul.f32 %v1000, %v920
        %v1073 = vmul.f32 %v1001, %v930
        %v1074 = vmul.f32 %v1002, %v930
        %v1075 = vmul.f32 %v1003, %v930
        %v1076 = vmul.f32 %v1004, %v930
        %v1077 = vmul.f32 %v1005, %v930
        %v1078 = vmul.f32 %v1006, %v930
        %v1079 = vmul.f32 %v1007, %v940
        %v1080 = vmul.f32 %v1008, %v940
        %v1081 = vmul.f32 %v1009, %v940
        %v1082 = vmul.f32 %v1010, %v940
        %v1083 = vmul.f32 %v1011, %v940
        %v1084 = vmul.f32 %v1012, %v940
        %v1085 = vld [vmem:[#allocation6] sm:$0xff]
        %v1086 = vld [vmem:[#allocation6 + $0x8] sm:$0xff]
        %v1087 = vld [vmem:[#allocation6 + $0x10] sm:$0xff]
        %v1088 = vld [vmem:[#allocation6 + $0x18] sm:$0xff]
        %v1089 = vld [vmem:[#allocation6 + $0x20] sm:$0xff]
        %v1090 = vld [vmem:[#allocation6 + $0x28] sm:$0xff]
        %v1091 = vld [vmem:[#allocation6 + $0x30] sm:$0xff]
        %v1092 = vld [vmem:[#allocation6 + $0x38] sm:$0xff]
        %v1093 = vld [vmem:[#allocation6 + $0x40] sm:$0xff]
        %v1094 = vld [vmem:[#allocation6 + $0x48] sm:$0xff]
        %v1095 = vld [vmem:[#allocation6 + $0x50] sm:$0xff]
        %v1096 = vld [vmem:[#allocation6 + $0x58] sm:$0xff]
        %v1097 = vld [vmem:[#allocation6 + $0x60] sm:$0xff]
        %v1098 = vld [vmem:[#allocation6 + $0x68] sm:$0xff]
        %v1099 = vld [vmem:[#allocation6 + $0x70] sm:$0xff]
        %v1100 = vld [vmem:[#allocation6 + $0x78] sm:$0xff]
        %v1101 = vld [vmem:[#allocation6 + $0x80] sm:$0xff]
        %v1102 = vld [vmem:[#allocation6 + $0x88] sm:$0xff]
        %v1103 = vld [vmem:[#allocation6 + $0x90] sm:$0xff]
        %v1104 = vld [vmem:[#allocation6 + $0x98] sm:$0xff]
        %v1105 = vld [vmem:[#allocation6 + $0xa0] sm:$0xff]
        %v1106 = vld [vmem:[#allocation6 + $0xa8] sm:$0xff]
        %v1107 = vld [vmem:[#allocation6 + $0xb0] sm:$0xff]
        %v1108 = vld [vmem:[#allocation6 + $0xb8] sm:$0xff]
        %v1109 = vld [vmem:[#allocation6 + $0xc0] sm:$0xff]
        %v1110 = vld [vmem:[#allocation6 + $0xc8] sm:$0xff]
        %v1111 = vld [vmem:[#allocation6 + $0xd0] sm:$0xff]
        %v1112 = vld [vmem:[#allocation6 + $0xd8] sm:$0xff]
        %v1113 = vld [vmem:[#allocation6 + $0xe0] sm:$0xff]
        %v1114 = vld [vmem:[#allocation6 + $0xe8] sm:$0xff]
        %v1115 = vld [vmem:[#allocation6 + $0xf0] sm:$0xff]
        %v1116 = vld [vmem:[#allocation6 + $0xf8] sm:$0xff]
        %v1117 = vld [vmem:[#allocation6 + $0x100] sm:$0xff]
        %v1118 = vld [vmem:[#allocation6 + $0x108] sm:$0xff]
        %v1119 = vld [vmem:[#allocation6 + $0x110] sm:$0xff]
        %v1120 = vld [vmem:[#allocation6 + $0x118] sm:$0xff]
        %v1121 = vld [vmem:[#allocation6 + $0x120] sm:$0xff]
        %v1122 = vld [vmem:[#allocation6 + $0x128] sm:$0xff]
        %v1123 = vld [vmem:[#allocation6 + $0x130] sm:$0xff]
        %v1124 = vld [vmem:[#allocation6 + $0x138] sm:$0xff]
        %v1125 = vld [vmem:[#allocation6 + $0x140] sm:$0xff]
        %v1126 = vld [vmem:[#allocation6 + $0x148] sm:$0xff]
        %v1127 = vld [vmem:[#allocation6 + $0x150] sm:$0xff]
        %v1128 = vld [vmem:[#allocation6 + $0x158] sm:$0xff]
        %v1129 = vld [vmem:[#allocation6 + $0x160] sm:$0xff]
        %v1130 = vld [vmem:[#allocation6 + $0x168] sm:$0xff]
        %v1131 = vld [vmem:[#allocation6 + $0x170] sm:$0xff]
        %v1132 = vld [vmem:[#allocation6 + $0x178] sm:$0xff]
        %v1133 = vld [vmem:[#allocation6 + $0x180] sm:$0xff]
        %v1134 = vld [vmem:[#allocation6 + $0x188] sm:$0xff]
        %v1135 = vld [vmem:[#allocation6 + $0x190] sm:$0xff]
        %v1136 = vld [vmem:[#allocation6 + $0x198] sm:$0xff]
        %v1137 = vld [vmem:[#allocation6 + $0x1a0] sm:$0xff]
        %v1138 = vld [vmem:[#allocation6 + $0x1a8] sm:$0xff]
        %v1139 = vld [vmem:[#allocation6 + $0x1b0] sm:$0xff]
        %v1140 = vld [vmem:[#allocation6 + $0x1b8] sm:$0xff]
        %v1141 = vld [vmem:[#allocation6 + $0x1c0] sm:$0xff]
        %v1142 = vld [vmem:[#allocation6 + $0x1c8] sm:$0xff]
        %v1143 = vld [vmem:[#allocation6 + $0x1d0] sm:$0xff]
        %v1144 = vld [vmem:[#allocation6 + $0x1d8] sm:$0xff]
        %v1145 = vld [vmem:[#allocation6 + $0x1e0] sm:$0xff]
        %v1146 = vld [vmem:[#allocation6 + $0x1e8] sm:$0xff]
        %v1147 = vld [vmem:[#allocation6 + $0x1f0] sm:$0xff]
        %v1148 = vld [vmem:[#allocation6 + $0x1f8] sm:$0xff]
        %v1149 = vld [vmem:[#allocation6 + $0x200] sm:$0xff]
        %v1150 = vld [vmem:[#allocation6 + $0x208] sm:$0xff]
        %v1151 = vld [vmem:[#allocation6 + $0x210] sm:$0xff]
        %v1152 = vld [vmem:[#allocation6 + $0x218] sm:$0xff]
        %v1153 = vld [vmem:[#allocation6 + $0x220] sm:$0xff]
        %v1154 = vld [vmem:[#allocation6 + $0x228] sm:$0xff]
        %v1155 = vld [vmem:[#allocation6 + $0x230] sm:$0xff]
        %v1156 = vld [vmem:[#allocation6 + $0x238] sm:$0xff]
        %v1157 = vld [vmem:[#allocation6 + $0x240] sm:$0xff]
        %v1158 = vld [vmem:[#allocation6 + $0x248] sm:$0xff]
        %v1159 = vld [vmem:[#allocation6 + $0x250] sm:$0xff]
        %v1160 = vld [vmem:[#allocation6 + $0x258] sm:$0xff]
        %v1161 = vld [vmem:[#allocation6 + $0x260] sm:$0xff]
        %v1162 = vld [vmem:[#allocation6 + $0x268] sm:$0xff]
        %v1163 = vld [vmem:[#allocation6 + $0x270] sm:$0xff]
        %v1164 = vld [vmem:[#allocation6 + $0x278] sm:$0xff]
        %v1165 = vld [vmem:[#allocation6 + $0x280] sm:$0xff]
        %v1166 = vld [vmem:[#allocation6 + $0x288] sm:$0xff]
        %v1167 = vld [vmem:[#allocation6 + $0x290] sm:$0xff]
        %v1168 = vld [vmem:[#allocation6 + $0x298] sm:$0xff]
        %v1169 = vld [vmem:[#allocation6 + $0x2a0] sm:$0xff]
        %v1170 = vld [vmem:[#allocation6 + $0x2a8] sm:$0xff]
        %v1171 = vld [vmem:[#allocation6 + $0x2b0] sm:$0xff]
        %v1172 = vld [vmem:[#allocation6 + $0x2b8] sm:$0xff]
        %v1173 = vld [vmem:[#allocation6 + $0x2c0] sm:$0xff]
        %v1174 = vld [vmem:[#allocation6 + $0x2c8] sm:$0xff]
        %v1175 = vld [vmem:[#allocation6 + $0x2d0] sm:$0xff]
        %v1176 = vld [vmem:[#allocation6 + $0x2d8] sm:$0xff]
        %v1177 = vld [vmem:[#allocation6 + $0x2e0] sm:$0xff]
        %v1178 = vld [vmem:[#allocation6 + $0x2e8] sm:$0xff]
        %v1179 = vld [vmem:[#allocation6 + $0x2f0] sm:$0xff]
        %v1180 = vld [vmem:[#allocation6 + $0x2f8] sm:$0xff]
        %v1181 = vld [vmem:[#allocation7] sm:$0x1]
        %v1183 = vperm.slane %v1181, 0
        %1185 = vmatpush.msra.mxu0 %v1100
        %1186 = vmatpush.msra.mxu0 %v1099
        %1187 = vmatpush.msra.mxu0 %v1098
        %1188 = vmatpush.msra.mxu0 %v1097
        %1189 = vmatpush.msra.mxu0 %v1096
        %1190 = vmatpush.msra.mxu0 %v1095
        %1191 = vmatpush.msra.mxu0 %v1094
        %1192 = vmatpush.msra.mxu0 %v1093
        %1193 = vmatpush.msra.mxu0 %v1092
        %1194 = vmatpush.msra.mxu0 %v1091
        %1195 = vmatpush.msra.mxu0 %v1090
        %1196 = vmatpush.msra.mxu0 %v1089
        %1197 = vmatpush.msra.mxu0 %v1088
        %1198 = vmatpush.msra.mxu0 %v1087
        %1199 = vmatpush.msra.mxu0 %v1086
        %1200 = vmatpush.msra.mxu0 %v1085
        %1201 = vmatmul.f32.gmra.mxu0 %v1013
        %v1202 = vpop.f32.mrf.mxu0
        %v1203 = vadd.f32 %v1183, %v1202
        %1204 = vmatmul.f32.gmra.mxu0 %v1019
        %v1205 = vpop.f32.mrf.mxu0
        %v1206 = vadd.f32 %v1183, %v1205
        %1207 = vmatmul.f32.gmra.mxu0 %v1025
        %v1208 = vpop.f32.mrf.mxu0
        %v1209 = vadd.f32 %v1183, %v1208
        %1210 = vmatmul.f32.gmra.mxu0 %v1031
        %v1211 = vpop.f32.mrf.mxu0
        %v1212 = vadd.f32 %v1183, %v1211
        %1213 = vmatmul.f32.gmra.mxu0 %v1037
        %v1214 = vpop.f32.mrf.mxu0
        %v1215 = vadd.f32 %v1183, %v1214
        %1216 = vmatmul.f32.gmra.mxu0 %v1043
        %v1217 = vpop.f32.mrf.mxu0
        %v1218 = vadd.f32 %v1183, %v1217
        %1219 = vmatmul.f32.gmra.mxu0 %v1049
        %v1220 = vpop.f32.mrf.mxu0
        %v1221 = vadd.f32 %v1183, %v1220
        %1222 = vmatmul.f32.gmra.mxu0 %v1055
        %v1223 = vpop.f32.mrf.mxu0
        %v1224 = vadd.f32 %v1183, %v1223
        %1225 = vmatmul.f32.gmra.mxu0 %v1061
        %v1226 = vpop.f32.mrf.mxu0
        %v1227 = vadd.f32 %v1183, %v1226
        %1228 = vmatmul.f32.gmra.mxu0 %v1067
        %v1229 = vpop.f32.mrf.mxu0
        %v1230 = vadd.f32 %v1183, %v1229
        %1231 = vmatmul.f32.gmra.mxu0 %v1073
        %v1232 = vpop.f32.mrf.mxu0
        %v1233 = vadd.f32 %v1183, %v1232
        %1234 = vmatmul.f32.gmra.mxu0 %v1079
        %v1235 = vpop.f32.mrf.mxu0
        %v1236 = vadd.f32 %v1183, %v1235
        %1237 = vdwg.mxu0
        %1238 = vmatpush.msra.mxu0 %v1116
        %1239 = vmatpush.msra.mxu0 %v1115
        %1240 = vmatpush.msra.mxu0 %v1114
        %1241 = vmatpush.msra.mxu0 %v1113
        %1242 = vmatpush.msra.mxu0 %v1112
        %1243 = vmatpush.msra.mxu0 %v1111
        %1244 = vmatpush.msra.mxu0 %v1110
        %1245 = vmatpush.msra.mxu0 %v1109
        %1246 = vmatpush.msra.mxu0 %v1108
        %1247 = vmatpush.msra.mxu0 %v1107
        %1248 = vmatpush.msra.mxu0 %v1106
        %1249 = vmatpush.msra.mxu0 %v1105
        %1250 = vmatpush.msra.mxu0 %v1104
        %1251 = vmatpush.msra.mxu0 %v1103
        %1252 = vmatpush.msra.mxu0 %v1102
        %1253 = vmatpush.msra.mxu0 %v1101
        %1254 = vmatmul.f32.gmra.mxu0 %v1014
        %v1255 = vpop.f32.mrf.mxu0
        %v1256 = vadd.f32 %v1203, %v1255
        %1257 = vmatmul.f32.gmra.mxu0 %v1020
        %v1258 = vpop.f32.mrf.mxu0
        %v1259 = vadd.f32 %v1206, %v1258
        %1260 = vmatmul.f32.gmra.mxu0 %v1026
        %v1261 = vpop.f32.mrf.mxu0
        %v1262 = vadd.f32 %v1209, %v1261
        %1263 = vmatmul.f32.gmra.mxu0 %v1032
        %v1264 = vpop.f32.mrf.mxu0
        %v1265 = vadd.f32 %v1212, %v1264
        %1266 = vmatmul.f32.gmra.mxu0 %v1038
        %v1267 = vpop.f32.mrf.mxu0
        %v1268 = vadd.f32 %v1215, %v1267
        %1269 = vmatmul.f32.gmra.mxu0 %v1044
        %v1270 = vpop.f32.mrf.mxu0
        %v1271 = vadd.f32 %v1218, %v1270
        %1272 = vmatmul.f32.gmra.mxu0 %v1050
        %v1273 = vpop.f32.mrf.mxu0
        %v1274 = vadd.f32 %v1221, %v1273
        %1275 = vmatmul.f32.gmra.mxu0 %v1056
        %v1276 = vpop.f32.mrf.mxu0
        %v1277 = vadd.f32 %v1224, %v1276
        %1278 = vmatmul.f32.gmra.mxu0 %v1062
        %v1279 = vpop.f32.mrf.mxu0
        %v1280 = vadd.f32 %v1227, %v1279
        %1281 = vmatmul.f32.gmra.mxu0 %v1068
        %v1282 = vpop.f32.mrf.mxu0
        %v1283 = vadd.f32 %v1230, %v1282
        %1284 = vmatmul.f32.gmra.mxu0 %v1074
        %v1285 = vpop.f32.mrf.mxu0
        %v1286 = vadd.f32 %v1233, %v1285
        %1287 = vmatmul.f32.gmra.mxu0 %v1080
        %v1288 = vpop.f32.mrf.mxu0
        %v1289 = vadd.f32 %v1236, %v1288
        %1290 = vdwg.mxu0
        %1291 = vmatpush.msra.mxu0 %v1132
        %1292 = vmatpush.msra.mxu0 %v1131
        %1293 = vmatpush.msra.mxu0 %v1130
        %1294 = vmatpush.msra.mxu0 %v1129
        %1295 = vmatpush.msra.mxu0 %v1128
        %1296 = vmatpush.msra.mxu0 %v1127
        %1297 = vmatpush.msra.mxu0 %v1126
        %1298 = vmatpush.msra.mxu0 %v1125
        %1299 = vmatpush.msra.mxu0 %v1124
        %1300 = vmatpush.msra.mxu0 %v1123
        %1301 = vmatpush.msra.mxu0 %v1122
        %1302 = vmatpush.msra.mxu0 %v1121
        %1303 = vmatpush.msra.mxu0 %v1120
        %1304 = vmatpush.msra.mxu0 %v1119
        %1305 = vmatpush.msra.mxu0 %v1118
        %1306 = vmatpush.msra.mxu0 %v1117
        %1307 = vmatmul.f32.gmra.mxu0 %v1015
        %v1308 = vpop.f32.mrf.mxu0
        %v1309 = vadd.f32 %v1256, %v1308
        %1310 = vmatmul.f32.gmra.mxu0 %v1021
        %v1311 = vpop.f32.mrf.mxu0
        %v1312 = vadd.f32 %v1259, %v1311
        %1313 = vmatmul.f32.gmra.mxu0 %v1027
        %v1314 = vpop.f32.mrf.mxu0
        %v1315 = vadd.f32 %v1262, %v1314
        %1316 = vmatmul.f32.gmra.mxu0 %v1033
        %v1317 = vpop.f32.mrf.mxu0
        %v1318 = vadd.f32 %v1265, %v1317
        %1319 = vmatmul.f32.gmra.mxu0 %v1039
        %v1320 = vpop.f32.mrf.mxu0
        %v1321 = vadd.f32 %v1268, %v1320
        %1322 = vmatmul.f32.gmra.mxu0 %v1045
        %v1323 = vpop.f32.mrf.mxu0
        %v1324 = vadd.f32 %v1271, %v1323
        %1325 = vmatmul.f32.gmra.mxu0 %v1051
        %v1326 = vpop.f32.mrf.mxu0
        %v1327 = vadd.f32 %v1274, %v1326
        %1328 = vmatmul.f32.gmra.mxu0 %v1057
        %v1329 = vpop.f32.mrf.mxu0
        %v1330 = vadd.f32 %v1277, %v1329
        %1331 = vmatmul.f32.gmra.mxu0 %v1063
        %v1332 = vpop.f32.mrf.mxu0
        %v1333 = vadd.f32 %v1280, %v1332
        %1334 = vmatmul.f32.gmra.mxu0 %v1069
        %v1335 = vpop.f32.mrf.mxu0
        %v1336 = vadd.f32 %v1283, %v1335
        %1337 = vmatmul.f32.gmra.mxu0 %v1075
        %v1338 = vpop.f32.mrf.mxu0
        %v1339 = vadd.f32 %v1286, %v1338
        %1340 = vmatmul.f32.gmra.mxu0 %v1081
        %v1341 = vpop.f32.mrf.mxu0
        %v1342 = vadd.f32 %v1289, %v1341
        %1343 = vdwg.mxu0
        %1344 = vmatpush.msra.mxu0 %v1148
        %1345 = vmatpush.msra.mxu0 %v1147
        %1346 = vmatpush.msra.mxu0 %v1146
        %1347 = vmatpush.msra.mxu0 %v1145
        %1348 = vmatpush.msra.mxu0 %v1144
        %1349 = vmatpush.msra.mxu0 %v1143
        %1350 = vmatpush.msra.mxu0 %v1142
        %1351 = vmatpush.msra.mxu0 %v1141
        %1352 = vmatpush.msra.mxu0 %v1140
        %1353 = vmatpush.msra.mxu0 %v1139
        %1354 = vmatpush.msra.mxu0 %v1138
        %1355 = vmatpush.msra.mxu0 %v1137
        %1356 = vmatpush.msra.mxu0 %v1136
        %1357 = vmatpush.msra.mxu0 %v1135
        %1358 = vmatpush.msra.mxu0 %v1134
        %1359 = vmatpush.msra.mxu0 %v1133
        %1360 = vmatmul.f32.gmra.mxu0 %v1016
        %v1361 = vpop.f32.mrf.mxu0
        %v1362 = vadd.f32 %v1309, %v1361
        %1363 = vmatmul.f32.gmra.mxu0 %v1022
        %v1364 = vpop.f32.mrf.mxu0
        %v1365 = vadd.f32 %v1312, %v1364
        %1366 = vmatmul.f32.gmra.mxu0 %v1028
        %v1367 = vpop.f32.mrf.mxu0
        %v1368 = vadd.f32 %v1315, %v1367
        %1369 = vmatmul.f32.gmra.mxu0 %v1034
        %v1370 = vpop.f32.mrf.mxu0
        %v1371 = vadd.f32 %v1318, %v1370
        %1372 = vmatmul.f32.gmra.mxu0 %v1040
        %v1373 = vpop.f32.mrf.mxu0
        %v1374 = vadd.f32 %v1321, %v1373
        %1375 = vmatmul.f32.gmra.mxu0 %v1046
        %v1376 = vpop.f32.mrf.mxu0
        %v1377 = vadd.f32 %v1324, %v1376
        %1378 = vmatmul.f32.gmra.mxu0 %v1052
        %v1379 = vpop.f32.mrf.mxu0
        %v1380 = vadd.f32 %v1327, %v1379
        %1381 = vmatmul.f32.gmra.mxu0 %v1058
        %v1382 = vpop.f32.mrf.mxu0
        %v1383 = vadd.f32 %v1330, %v1382
        %1384 = vmatmul.f32.gmra.mxu0 %v1064
        %v1385 = vpop.f32.mrf.mxu0
        %v1386 = vadd.f32 %v1333, %v1385
        %1387 = vmatmul.f32.gmra.mxu0 %v1070
        %v1388 = vpop.f32.mrf.mxu0
        %v1389 = vadd.f32 %v1336, %v1388
        %1390 = vmatmul.f32.gmra.mxu0 %v1076
        %v1391 = vpop.f32.mrf.mxu0
        %v1392 = vadd.f32 %v1339, %v1391
        %1393 = vmatmul.f32.gmra.mxu0 %v1082
        %v1394 = vpop.f32.mrf.mxu0
        %v1395 = vadd.f32 %v1342, %v1394
        %1396 = vdwg.mxu0
        %1397 = vmatpush.msra.mxu0 %v1164
        %1398 = vmatpush.msra.mxu0 %v1163
        %1399 = vmatpush.msra.mxu0 %v1162
        %1400 = vmatpush.msra.mxu0 %v1161
        %1401 = vmatpush.msra.mxu0 %v1160
        %1402 = vmatpush.msra.mxu0 %v1159
        %1403 = vmatpush.msra.mxu0 %v1158
        %1404 = vmatpush.msra.mxu0 %v1157
        %1405 = vmatpush.msra.mxu0 %v1156
        %1406 = vmatpush.msra.mxu0 %v1155
        %1407 = vmatpush.msra.mxu0 %v1154
        %1408 = vmatpush.msra.mxu0 %v1153
        %1409 = vmatpush.msra.mxu0 %v1152
        %1410 = vmatpush.msra.mxu0 %v1151
        %1411 = vmatpush.msra.mxu0 %v1150
        %1412 = vmatpush.msra.mxu0 %v1149
        %1413 = vmatmul.f32.gmra.mxu0 %v1017
        %v1414 = vpop.f32.mrf.mxu0
        %v1415 = vadd.f32 %v1362, %v1414
        %1416 = vmatmul.f32.gmra.mxu0 %v1023
        %v1417 = vpop.f32.mrf.mxu0
        %v1418 = vadd.f32 %v1365, %v1417
        %1419 = vmatmul.f32.gmra.mxu0 %v1029
        %v1420 = vpop.f32.mrf.mxu0
        %v1421 = vadd.f32 %v1368, %v1420
        %1422 = vmatmul.f32.gmra.mxu0 %v1035
        %v1423 = vpop.f32.mrf.mxu0
        %v1424 = vadd.f32 %v1371, %v1423
        %1425 = vmatmul.f32.gmra.mxu0 %v1041
        %v1426 = vpop.f32.mrf.mxu0
        %v1427 = vadd.f32 %v1374, %v1426
        %1428 = vmatmul.f32.gmra.mxu0 %v1047
        %v1429 = vpop.f32.mrf.mxu0
        %v1430 = vadd.f32 %v1377, %v1429
        %1431 = vmatmul.f32.gmra.mxu0 %v1053
        %v1432 = vpop.f32.mrf.mxu0
        %v1433 = vadd.f32 %v1380, %v1432
        %1434 = vmatmul.f32.gmra.mxu0 %v1059
        %v1435 = vpop.f32.mrf.mxu0
        %v1436 = vadd.f32 %v1383, %v1435
        %1437 = vmatmul.f32.gmra.mxu0 %v1065
        %v1438 = vpop.f32.mrf.mxu0
        %v1439 = vadd.f32 %v1386, %v1438
        %1440 = vmatmul.f32.gmra.mxu0 %v1071
        %v1441 = vpop.f32.mrf.mxu0
        %v1442 = vadd.f32 %v1389, %v1441
        %1443 = vmatmul.f32.gmra.mxu0 %v1077
        %v1444 = vpop.f32.mrf.mxu0
        %v1445 = vadd.f32 %v1392, %v1444
        %1446 = vmatmul.f32.gmra.mxu0 %v1083
        %v1447 = vpop.f32.mrf.mxu0
        %v1448 = vadd.f32 %v1395, %v1447
        %1449 = vdwg.mxu0
        %1450 = vmatpush.msra.mxu0 %v1180
        %1451 = vmatpush.msra.mxu0 %v1179
        %1452 = vmatpush.msra.mxu0 %v1178
        %1453 = vmatpush.msra.mxu0 %v1177
        %1454 = vmatpush.msra.mxu0 %v1176
        %1455 = vmatpush.msra.mxu0 %v1175
        %1456 = vmatpush.msra.mxu0 %v1174
        %1457 = vmatpush.msra.mxu0 %v1173
        %1458 = vmatpush.msra.mxu0 %v1172
        %1459 = vmatpush.msra.mxu0 %v1171
        %1460 = vmatpush.msra.mxu0 %v1170
        %1461 = vmatpush.msra.mxu0 %v1169
        %1462 = vmatpush.msra.mxu0 %v1168
        %1463 = vmatpush.msra.mxu0 %v1167
        %1464 = vmatpush.msra.mxu0 %v1166
        %1465 = vmatpush.msra.mxu0 %v1165
        %1466 = vmatmul.f32.gmra.mxu0 %v1018
        %v1467 = vpop.f32.mrf.mxu0
        %v1468 = vadd.f32 %v1415, %v1467
        %1469 = vmatmul.f32.gmra.mxu0 %v1024
        %v1470 = vpop.f32.mrf.mxu0
        %v1471 = vadd.f32 %v1418, %v1470
        %1472 = vmatmul.f32.gmra.mxu0 %v1030
        %v1473 = vpop.f32.mrf.mxu0
        %v1474 = vadd.f32 %v1421, %v1473
        %1475 = vmatmul.f32.gmra.mxu0 %v1036
        %v1476 = vpop.f32.mrf.mxu0
        %v1477 = vadd.f32 %v1424, %v1476
        %1478 = vmatmul.f32.gmra.mxu0 %v1042
        %v1479 = vpop.f32.mrf.mxu0
        %v1480 = vadd.f32 %v1427, %v1479
        %1481 = vmatmul.f32.gmra.mxu0 %v1048
        %v1482 = vpop.f32.mrf.mxu0
        %v1483 = vadd.f32 %v1430, %v1482
        %1484 = vmatmul.f32.gmra.mxu0 %v1054
        %v1485 = vpop.f32.mrf.mxu0
        %v1486 = vadd.f32 %v1433, %v1485
        %1487 = vmatmul.f32.gmra.mxu0 %v1060
        %v1488 = vpop.f32.mrf.mxu0
        %v1489 = vadd.f32 %v1436, %v1488
        %1490 = vmatmul.f32.gmra.mxu0 %v1066
        %v1491 = vpop.f32.mrf.mxu0
        %v1492 = vadd.f32 %v1439, %v1491
        %1493 = vmatmul.f32.gmra.mxu0 %v1072
        %v1494 = vpop.f32.mrf.mxu0
        %v1495 = vadd.f32 %v1442, %v1494
        %1496 = vmatmul.f32.gmra.mxu0 %v1078
        %v1497 = vpop.f32.mrf.mxu0
        %v1498 = vadd.f32 %v1445, %v1497
        %1499 = vmatmul.f32.gmra.mxu0 %v1084
        %v1500 = vpop.f32.mrf.mxu0
        %v1501 = vadd.f32 %v1448, %v1500
        %1502 = vdwg.mxu0
        %vm1503 = vcmask 15360
        %1504 = vst.msk [vmem:[%s296] sm:$0xff] %vm1503, %v1468
        %1505 = vst.msk [vmem:[%s296 + $0x8] sm:$0xff] %vm1503, %v1471
        %1506 = vst.msk [vmem:[%s296 + $0x10] sm:$0xff] %vm1503, %v1474
        %1507 = vst.msk [vmem:[%s296 + $0x18] sm:$0xff] %vm1503, %v1477
        %1508 = vst.msk [vmem:[%s296 + $0x20] sm:$0xff] %vm1503, %v1480
        %1509 = vst.msk [vmem:[%s296 + $0x28] sm:$0xff] %vm1503, %v1483
        %1510 = vst.msk [vmem:[%s296 + $0x30] sm:$0xff] %vm1503, %v1486
        %1511 = vst.msk [vmem:[%s296 + $0x38] sm:$0xff] %vm1503, %v1489
        %1512 = vst.msk [vmem:[%s296 + $0x40] sm:$0xff] %vm1503, %v1492
        %1513 = vst.msk [vmem:[%s296 + $0x48] sm:$0xff] %vm1503, %v1495
        %1514 = vst.msk [vmem:[%s296 + $0x50] sm:$0xff] %vm1503, %v1498
        %1515 = vst.msk [vmem:[%s296 + $0x58] sm:$0xff] %vm1503, %v1501
        %s1516 = smul.u32 12, %s22
        %p1517 = scmp.lt.s32.totalorder %s1516, 47
        %s1518 = scalar_select %p1517, %s1516, 47
        %s1519 = smul.addr %s1518, 8
        %s1520 = scalar_lea.vmem %s4, %s1519
        // Predicated region
        $region53: #{fused_forward.1} parent=35 // pred_check
          %p1521 = pneg %p134
        $region54: #{fused_forward.1} parent=35 // pred_check_branch
          %1523 = sbr.rel (%p1521) target = $region56
        $region55: #{fused_forward.1} parent=35 // pred_region
          %s1524 = smul.u32 12, %s22
        $region56: #{fused_forward.1} parent=35 // pred_fallthru
          _
      $region36: #{fused_forward.1} parent=5 // pred_fallthru
        _
      %p1525 = scmp.le.s32.totalorder 2, %s17
      // Predicated region
      $region57: #{fused_forward.1} parent=5 // pred_check
        %p1526 = pneg %p1525
      $region58: #{fused_forward.1} parent=5 // pred_check_branch
        %1528 = sbr.rel (%p1526) target = $region60
      $region59: #{fused_forward.1} parent=5 // pred_region
        %s1529 = ssub.s32 %s17, 2
        // Predicated region
        $region61: #{fused_forward.1} parent=59 // pred_check
          %p1530 = pneg %p140
        $region62: #{fused_forward.1} parent=59 // pred_check_branch
          %1532 = sbr.rel (%p1530) target = $region64
        $region63: #{fused_forward.1} parent=59 // pred_region
          %s1533 = smul.u32 12, %s23
          %p1534 = scmp.lt.s32.totalorder %s1533, 47
          %s1535 = scalar_select %p1534, %s1533, 47
          %s1536 = smul.addr %s1535, 8
          %s1537 = scalar_lea.vmem %s4, %s1536
        $region64: #{fused_forward.1} parent=59 // pred_fallthru
          _
      $region60: #{fused_forward.1} parent=5 // pred_fallthru
        _
    $region6: #{fused_forward.1} parent=1 // loop_footer
      %s21 = sadd.s32 1, %s17
    $region7: #{fused_forward.1} parent=1 // loop_footer_branch
      %16 = sbr.rel target = $region3
    $region8: #{fused_forward.1} parent=1 // loop_exit
      _
    %1538 = vsyncpa [#allocation3], 1
    %s1539 = scalar_lea.sflag [#allocation3], 1
    %1540 = vsyncpa %s1539, 1
    %1541 = vsyncpa [#allocation5], 1
    %s1542 = scalar_lea.sflag [#allocation5], 1
    %1543 = vsyncpa %s1542, 1
    %1544 = vsyncpa [#allocation8], 1

</llo_original>
